<compile_context>
chip_gen: v5e
topology: v5e:2x2
jax: 0.10.0
libtpu: 0.0.40
codegen_flags: <defaults>
</compile_context>

<pallas_src>
import functools

import jax
import jax.numpy as jnp
from jax import lax
from jax.experimental import pallas as pl
from jax.experimental.pallas import tpu as pltpu


def _tpu_config():
    """Returns (use_bf16, vmem_capacity_bytes) for the attached TPU."""
    try:
        kind = jax.devices()[0].device_kind.lower()
    except Exception:  # defensive: unknown backend
        kind = ""
    is_v7 = ("v7" in kind) or ("7x" in kind)
    # bf16 MXU inputs + bf16 tanh only where VPU/EUP have a bf16 path (v6e/v7x).
    use_bf16 = is_v7 or ("v6" in kind)
    try:
        vmem_cap = int(pltpu.get_tpu_info().vmem_capacity_bytes)
    except Exception:  # fall back from the device generation string
        vmem_cap = (64 if is_v7 else 128) * 1024 * 1024
    return use_bf16, vmem_cap


def _attention_kernel(ques_ref, img_ref,
                      w1_1a_ref, b1_1a_ref, w_2a_ref, w1_3b_ref, w2_3b_ref,
                      wfc_ref, bfc_ref,
                      out_ref, *, att_size, seq_valid, tanh_dtype):
    TB, S, C = img_ref.shape
    A = att_size
    mxu_dtype = w1_1a_ref.dtype                    # bf16 on v6e/v7x, f32 on v5e

    q = ques_ref[...].astype(jnp.float32)          # (TB, C) f32 accumulation base
    img3 = img_ref[...]                            # (TB, S, C) (maybe bf16)
    img2 = img3.reshape(TB * S, C)                 # free: S padded to tile mult

    w_2a = w_2a_ref[...]                           # (C, 2A) fused [fc1_2a | fc2_2a]
    w1_3b = w1_3b_ref[...].astype(tanh_dtype)      # (1, A)
    w2_3b = w2_3b_ref[...].astype(tanh_dtype)      # (1, A)

    # Single fused image projection for both hops: (TB*S, C) @ (C, 2A).
    ie = jnp.dot(img2.astype(mxu_dtype), w_2a,
                 preferred_element_type=jnp.float32).reshape(TB, S, 2 * A)
    ie1 = ie[:, :, :A]                             # lane-aligned slices (A = 512)
    ie2 = ie[:, :, A:]

    def hop(u, ie_hop, w_q, bias, w3b):
        qe = jnp.dot(u.astype(mxu_dtype), w_q,
                     preferred_element_type=jnp.float32)              # (TB, A)
        if bias is not None:
            qe = qe + bias
        # bf16 tanh on v6e/v7x: the single EUP is the saturating unit when C << A.
        h = jnp.tanh((ie_hop + qe[:, None, :]).astype(tanh_dtype))    # (TB, S, A)
        # fc*_3b as VPU multiply + lane reduction; its bias is a scalar shift
        # under softmax and is dropped (exact only because the head is A -> 1).
        logit = jnp.sum((h * w3b).astype(jnp.float32), axis=-1)       # (TB, S)
        if seq_valid < S:
            # Padded sequence positions must get zero attention weight.
            col = lax.broadcasted_iota(jnp.int32, (TB, S), 1)
            logit = jnp.where(col < seq_valid, logit, -1e30)
        m = jnp.max(logit, axis=-1, keepdims=True)
        e = jnp.exp(logit - m)
        p = e * pl.reciprocal(jnp.sum(e, axis=-1, keepdims=True), approx=True)
        att = jnp.sum(p[:, :, None] * img3, axis=1)                   # (TB, C) f32
        return u + att

    # Hop 1: fc1_1a (with bias) on q.
    u1 = hop(q, ie1, w1_1a_ref[...], b1_1a_ref[...], w1_3b)
    # Hop 2: reuses fc1_2a (= first half of the fused weight) on u1, no bias,
    # exactly as the PyTorch forward does.
    u2 = hop(u1, ie2, w_2a[:, :A], None, w2_3b)

    # Final classifier, lane-dense padded output.
    out_ref[...] = (jnp.dot(u2.astype(mxu_dtype), wfc_ref[...],
                            preferred_element_type=jnp.float32)
                    + bfc_ref[...])


def attention_forward(ques_feat, img_feat, p, *, tb=None, use_bf16=None):
    B, C = ques_feat.shape
    _, S, _ = img_feat.shape
    A = p["w1_1a"].shape[1]
    O = p["wfc"].shape[1]
    # Dropping the fc*_3b biases in the kernel is exact only for a 1-dim head.
    assert p["w1_3b"].shape[1] == 1 and p["w2_3b"].shape[1] == 1

    auto_bf16, vmem_cap = _tpu_config()
    if use_bf16 is None:
        use_bf16 = auto_bf16
    mxu_dtype = jnp.bfloat16 if use_bf16 else jnp.float32
    tanh_dtype = jnp.bfloat16 if use_bf16 else jnp.float32
    act_b = 2 if use_bf16 else 4

    # ---- pad S so (TB,S,C)<->(TB*S,C) reshapes stay sublane-tile aligned ----
    s_mult = 16 if use_bf16 else 8              # bf16 packs 16 sublanes / vreg
    S_pad = ((S + s_mult - 1) // s_mult) * s_mult
    # ---- lane-dense classifier output (avoid masked partial stores) ---------
    O_pad = ((O + 127) // 128) * 128

    # ---- per-batch-row VMEM footprint (bytes) for tb / vmem_limit sizing ----
    per_row = (2 * S_pad * C * act_b            # img tile, double-buffered
               + S_pad * 2 * A * 4              # fused ie slab (f32)
               + 2 * S_pad * A * act_b          # h1 / h2
               + S_pad * A * 4                  # f32 widen temp for the reduce
               + S_pad * C * 4                  # p * img promotion temp
               + 2 * (C * 4 + O_pad * 4))       # ques / out tiles, dbl-buffered
    w_bytes = ((C * A + C * 2 * A + C * O_pad) * act_b
               + (3 * A + O_pad) * 4)           # f32 biases + fc*_3b rows

    # ---- batch tile: multiple of 8, generation-aware, capped at 256 ---------
    if tb is None:
        budget = int(0.55 * vmem_cap) - 2 * w_bytes
        tb = (budget // max(per_row, 1)) // 8 * 8
    tb = int(max(8, min(256, (int(tb) // 8) * 8)))
    tb = min(tb, ((B + 7) // 8) * 8)
    B_pad = ((B + tb - 1) // tb) * tb

    # VMEM limit: weights (charged double-buffered) + tiles + slack, clamped to
    # ~85% of physical VMEM (~54 MiB on v7x, ~108 MiB on v5e/v6e) for headroom.
    vmem_limit = int(1.4 * (2 * w_bytes + tb * per_row)) + (4 << 20)
    vmem_limit = min(int(0.85 * vmem_cap), max(32 * 1024 * 1024, vmem_limit))

    # ---- input padding / casting ---------------------------------------------
    ques_p = ques_feat.astype(jnp.float32)
    img_p = img_feat.astype(jnp.float32)
    if S_pad != S:
        img_p = jnp.pad(img_p, ((0, 0), (0, S_pad - S), (0, 0)))
    if B_pad != B:
        ques_p = jnp.pad(ques_p, ((0, B_pad - B), (0, 0)))
        img_p = jnp.pad(img_p, ((0, B_pad - B), (0, 0), (0, 0)))
    img_p = img_p.astype(mxu_dtype)         # halves img DMA bytes on v6e/v7x

    # ---- weights: fused image projection, bf16 MXU operands, f32 biases -----
    w1_1a = p["w1_1a"].astype(mxu_dtype)
    w_2a = jnp.concatenate([p["w1_2a"], p["w2_2a"]], axis=1).astype(mxu_dtype)
    wfc = jnp.pad(p["wfc"], ((0, 0), (0, O_pad - O))).astype(mxu_dtype)
    b1_1a = p["b1_1a"].astype(jnp.float32)
    bfc = jnp.pad(p["bfc"], ((0, 0), (0, O_pad - O))).astype(jnp.float32)
    w1_3b = p["w1_3b"].reshape(1, A).astype(jnp.float32)
    w2_3b = p["w2_3b"].reshape(1, A).astype(jnp.float32)
    weights = (w1_1a, b1_1a, w_2a, w1_3b, w2_3b, wfc, bfc)

    def full_spec(arr):
        zeros = (0,) * arr.ndim
        return pl.BlockSpec(arr.shape, lambda b, _z=zeros: _z)   # fetched once

    in_specs = [
        pl.BlockSpec((tb, C), lambda b: (b, 0)),            # ques tile
        pl.BlockSpec((tb, S_pad, C), lambda b: (b, 0, 0)),  # img tile
    ] + [full_spec(w) for w in weights]                     # resident weights

    kernel = functools.partial(_attention_kernel, att_size=A,
                               seq_valid=S, tanh_dtype=tanh_dtype)

    out = pl.pallas_call(
        kernel,
        out_shape=jax.ShapeDtypeStruct((B_pad, O_pad), jnp.float32),
        grid_spec=pltpu.PrefetchScalarGridSpec(
            num_scalar_prefetch=0,
            grid=(B_pad // tb,),
            in_specs=in_specs,
            out_specs=pl.BlockSpec((tb, O_pad), lambda b: (b, 0)),
        ),
        compiler_params=pltpu.CompilerParams(
            dimension_semantics=("parallel",),   # batch axis shards across TCs
            vmem_limit_bytes=vmem_limit,
        ),
    )(ques_p, img_p, *weights)

    return out[:B, :O]


def attention_reference(ques, img, p):
    """Pure-JAX reference mirroring the PyTorch forward exactly (incl. biases)."""
    qe1 = ques @ p["w1_1a"] + p["b1_1a"]                         # (B, A)
    ie1 = img @ p["w1_2a"]                                       # (B, S, A)
    h1 = jnp.tanh(qe1[:, None, :] + ie1)
    l1 = jnp.einsum("bsa,ao->bso", h1, p["w1_3b"]) + p["b1_3b"]  # (B, S, 1)
    p1 = jax.nn.softmax(l1[..., 0], axis=1)                      # (B, S)
    att1 = jnp.einsum("bs,bsc->bc", p1, img)
    u1 = ques + att1
    qe2 = u1 @ p["w1_2a"]                                        # fc1_2a reused
    ie2 = img @ p["w2_2a"]
    h2 = jnp.tanh(qe2[:, None, :] + ie2)
    l2 = jnp.einsum("bsa,ao->bso", h2, p["w2_3b"]) + p["b2_3b"]
    p2 = jax.nn.softmax(l2[..., 0], axis=1)
    att2 = jnp.einsum("bs,bsc->bc", p2, img)
    u2 = u1 + att2
    return u2 @ p["wfc"] + p["bfc"]


def init_params(key, input_size, att_size, output_size):
    ks = jax.random.split(key, 10)
    s = 0.05
    return {
        "w1_1a": s * jax.random.normal(ks[0], (input_size, att_size), jnp.float32),
        "b1_1a": s * jax.random.normal(ks[1], (1, att_size), jnp.float32),
        "w1_2a": s * jax.random.normal(ks[2], (input_size, att_size), jnp.float32),
        "w1_3b": s * jax.random.normal(ks[3], (att_size, 1), jnp.float32),
        "b1_3b": s * jax.random.normal(ks[4], (1, 1), jnp.float32),
        "w2_2a": s * jax.random.normal(ks[5], (input_size, att_size), jnp.float32),
        "w2_3b": s * jax.random.normal(ks[6], (att_size, 1), jnp.float32),
        "b2_3b": s * jax.random.normal(ks[7], (1, 1), jnp.float32),
        "wfc":   s * jax.random.normal(ks[8], (input_size, output_size), jnp.float32),
        "bfc":   s * jax.random.normal(ks[9], (1, output_size), jnp.float32),
    }


if __name__ == "__main__":
    # Small shapes consistent with the module. att_size must be 512 (hard-coded
    # in the Linear layers). tb=8 exercises a two-step grid; production leaves
    # tb=None so it is sized from the chip's VMEM capacity.
    B, INPUT_SIZE, IMG_SEQ, ATT_SIZE, OUTPUT_SIZE = 16, 64, 8, 512, 16
    TB = 8

    key = jax.random.PRNGKey(0)
    k_q, k_i, k_p = jax.random.split(key, 3)
    ques_feat = jax.random.normal(k_q, (B, INPUT_SIZE), jnp.float32)
    img_feat = jax.random.normal(k_i, (B, IMG_SEQ, INPUT_SIZE), jnp.float32)
    params = init_params(k_p, INPUT_SIZE, ATT_SIZE, OUTPUT_SIZE)

    out = attention_forward(ques_feat, img_feat, params, tb=TB)
    out = jax.block_until_ready(out)

    ref = attention_reference(ques_feat, img_feat, params)
    assert out.shape == (B, OUTPUT_SIZE)

    use_bf16, _ = _tpu_config()
    # f32 path: only pl.reciprocal(approx=True) deviates (~2^-12 relative).
    # bf16 path (v6e/v7x): bf16 MXU inputs + bf16 tanh add ~0.4% rel rounding.
    tol = 5e-2 if use_bf16 else 2e-3
    max_err = float(jnp.max(jnp.abs(out - ref)))
    assert jnp.allclose(out, ref, rtol=tol, atol=tol), ("max_abs_err", max_err)
    print("KERNEL_OK")
</pallas_src>

<mosaic_0001>
module attributes {stable_mosaic.version = 11 : i64} {
  func.func @_attention_kernel(%arg0: i32, %arg1: memref<8x64xf32, #tpu.memory_space<vmem>>, %arg2: memref<8x8x64xf32, #tpu.memory_space<vmem>>, %arg3: memref<64x512xf32, #tpu.memory_space<vmem>>, %arg4: memref<1x512xf32, #tpu.memory_space<vmem>>, %arg5: memref<64x1024xf32, #tpu.memory_space<vmem>>, %arg6: memref<1x512xf32, #tpu.memory_space<vmem>>, %arg7: memref<1x512xf32, #tpu.memory_space<vmem>>, %arg8: memref<64x128xf32, #tpu.memory_space<vmem>>, %arg9: memref<1x128xf32, #tpu.memory_space<vmem>>, %arg10: memref<8x128xf32, #tpu.memory_space<vmem>>) attributes {dimension_semantics = [#tpu.dimension_semantics<parallel>], iteration_bounds = array<i64: 2>, scalar_prefetch = 0 : i64, scratch_operands = 0 : i64, tpu.core_type = #tpu.core_type<tc>, window_params = [{transform_indices = @transform_0, window_bounds = array<i64: 8, 64>}, {transform_indices = @transform_1, window_bounds = array<i64: 8, 8, 64>}, {pipeline_mode = #tpu.pipeline_mode<synchronous>, transform_indices = @transform_2, window_bounds = array<i64: 64, 512>}, {pipeline_mode = #tpu.pipeline_mode<synchronous>, transform_indices = @transform_3, window_bounds = array<i64: 1, 512>}, {pipeline_mode = #tpu.pipeline_mode<synchronous>, transform_indices = @transform_4, window_bounds = array<i64: 64, 1024>}, {pipeline_mode = #tpu.pipeline_mode<synchronous>, transform_indices = @transform_5, window_bounds = array<i64: 1, 512>}, {pipeline_mode = #tpu.pipeline_mode<synchronous>, transform_indices = @transform_6, window_bounds = array<i64: 1, 512>}, {pipeline_mode = #tpu.pipeline_mode<synchronous>, transform_indices = @transform_7, window_bounds = array<i64: 64, 128>}, {pipeline_mode = #tpu.pipeline_mode<synchronous>, transform_indices = @transform_8, window_bounds = array<i64: 1, 128>}, {transform_indices = @transform_9, window_bounds = array<i64: 8, 128>}]} {
    %c0 = arith.constant 0 : index
    %c0_0 = arith.constant 0 : index
    %0 = vector.load %arg1[%c0, %c0_0] : memref<8x64xf32, #tpu.memory_space<vmem>>, vector<8x64xf32>
    %c0_1 = arith.constant 0 : index
    %c0_2 = arith.constant 0 : index
    %c0_3 = arith.constant 0 : index
    %1 = vector.load %arg2[%c0_1, %c0_2, %c0_3] : memref<8x8x64xf32, #tpu.memory_space<vmem>>, vector<8x8x64xf32>
    %2 = vector.shape_cast %1 : vector<8x8x64xf32> to vector<64x64xf32>
    %c0_4 = arith.constant 0 : index
    %c0_5 = arith.constant 0 : index
    %3 = vector.load %arg5[%c0_4, %c0_5] : memref<64x1024xf32, #tpu.memory_space<vmem>>, vector<64x1024xf32>
    %c0_6 = arith.constant 0 : index
    %c0_7 = arith.constant 0 : index
    %4 = vector.load %arg6[%c0_6, %c0_7] : memref<1x512xf32, #tpu.memory_space<vmem>>, vector<1x512xf32>
    %c0_8 = arith.constant 0 : index
    %c0_9 = arith.constant 0 : index
    %5 = vector.load %arg7[%c0_8, %c0_9] : memref<1x512xf32, #tpu.memory_space<vmem>>, vector<1x512xf32>
    %cst = arith.constant dense<0.000000e+00> : vector<64x1024xf32>
    %6 = tpu.matmul %2, %3, %cst {dimension_numbers = #tpu.dot_dimension_numbers<[1], [0], [0], [1], [0, 0, 1, 1], [], []>} : vector<64x64xf32>, vector<64x1024xf32>, vector<64x1024xf32> -> vector<64x1024xf32>
    %7 = vector.shape_cast %6 : vector<64x1024xf32> to vector<8x8x1024xf32>
    %8 = vector.extract_strided_slice %7 {offsets = [0, 0, 0], sizes = [8, 8, 512], strides = [1, 1, 1]} : vector<8x8x1024xf32> to vector<8x8x512xf32>
    %9 = vector.extract_strided_slice %7 {offsets = [0, 0, 512], sizes = [8, 8, 512], strides = [1, 1, 1]} : vector<8x8x1024xf32> to vector<8x8x512xf32>
    %c0_10 = arith.constant 0 : index
    %c0_11 = arith.constant 0 : index
    %10 = vector.load %arg3[%c0_10, %c0_11] : memref<64x512xf32, #tpu.memory_space<vmem>>, vector<64x512xf32>
    %c0_12 = arith.constant 0 : index
    %c0_13 = arith.constant 0 : index
    %11 = vector.load %arg4[%c0_12, %c0_13] : memref<1x512xf32, #tpu.memory_space<vmem>>, vector<1x512xf32>
    %cst_14 = arith.constant dense<0.000000e+00> : vector<8x512xf32>
    %12 = tpu.matmul %0, %10, %cst_14 {dimension_numbers = #tpu.dot_dimension_numbers<[1], [0], [0], [1], [0, 0, 1, 1], [], []>} : vector<8x64xf32>, vector<64x512xf32>, vector<8x512xf32> -> vector<8x512xf32>
    %13 = vector.broadcast %11 : vector<1x512xf32> to vector<8x512xf32>
    %14 = arith.addf %12, %13 : vector<8x512xf32>
    %15 = vector.shape_cast %14 : vector<8x512xf32> to vector<8x1x512xf32>
    %16 = vector.broadcast %15 : vector<8x1x512xf32> to vector<8x8x512xf32>
    %17 = arith.addf %8, %16 : vector<8x8x512xf32>
    %18 = math.tanh %17 : vector<8x8x512xf32>
    %19 = vector.shape_cast %4 : vector<1x512xf32> to vector<1x1x512xf32>
    %20 = vector.broadcast %19 : vector<1x1x512xf32> to vector<8x8x512xf32>
    %21 = arith.mulf %18, %20 : vector<8x8x512xf32>
    %cst_15 = arith.constant dense<0.000000e+00> : vector<8x8xf32>
    %22 = vector.multi_reduction <add>, %21, %cst_15 [2] : vector<8x8x512xf32> to vector<8x8xf32>
    %cst_16 = arith.constant dense<0xFF800000> : vector<8xf32>
    %23 = vector.multi_reduction <maximumf>, %22, %cst_16 [1] : vector<8x8xf32> to vector<8xf32>
    %24 = vector.shape_cast %23 : vector<8xf32> to vector<8x1xf32>
    %25 = vector.broadcast %24 : vector<8x1xf32> to vector<8x8xf32>
    %26 = arith.subf %22, %25 : vector<8x8xf32>
    %27 = math.exp %26 : vector<8x8xf32>
    %cst_17 = arith.constant dense<0.000000e+00> : vector<8xf32>
    %28 = vector.multi_reduction <add>, %27, %cst_17 [1] : vector<8x8xf32> to vector<8xf32>
    %29 = vector.shape_cast %28 : vector<8xf32> to vector<8x1xf32>
    %30 = tpu.reciprocal %29 {approx = true} : vector<8x1xf32> -> vector<8x1xf32>
    %31 = vector.broadcast %30 : vector<8x1xf32> to vector<8x8xf32>
    %32 = arith.mulf %27, %31 : vector<8x8xf32>
    %33 = vector.shape_cast %32 : vector<8x8xf32> to vector<8x8x1xf32>
    %34 = vector.broadcast %33 : vector<8x8x1xf32> to vector<8x8x64xf32>
    %35 = arith.mulf %34, %1 : vector<8x8x64xf32>
    %cst_18 = arith.constant dense<0.000000e+00> : vector<8x64xf32>
    %36 = vector.multi_reduction <add>, %35, %cst_18 [1] : vector<8x8x64xf32> to vector<8x64xf32>
    %37 = arith.addf %0, %36 : vector<8x64xf32>
    %38 = vector.extract_strided_slice %3 {offsets = [0, 0], sizes = [64, 512], strides = [1, 1]} : vector<64x1024xf32> to vector<64x512xf32>
    %cst_19 = arith.constant dense<0.000000e+00> : vector<8x512xf32>
    %39 = tpu.matmul %37, %38, %cst_19 {dimension_numbers = #tpu.dot_dimension_numbers<[1], [0], [0], [1], [0, 0, 1, 1], [], []>} : vector<8x64xf32>, vector<64x512xf32>, vector<8x512xf32> -> vector<8x512xf32>
    %40 = vector.shape_cast %39 : vector<8x512xf32> to vector<8x1x512xf32>
    %41 = vector.broadcast %40 : vector<8x1x512xf32> to vector<8x8x512xf32>
    %42 = arith.addf %9, %41 : vector<8x8x512xf32>
    %43 = math.tanh %42 : vector<8x8x512xf32>
    %44 = vector.shape_cast %5 : vector<1x512xf32> to vector<1x1x512xf32>
    %45 = vector.broadcast %44 : vector<1x1x512xf32> to vector<8x8x512xf32>
    %46 = arith.mulf %43, %45 : vector<8x8x512xf32>
    %cst_20 = arith.constant dense<0.000000e+00> : vector<8x8xf32>
    %47 = vector.multi_reduction <add>, %46, %cst_20 [2] : vector<8x8x512xf32> to vector<8x8xf32>
    %cst_21 = arith.constant dense<0xFF800000> : vector<8xf32>
    %48 = vector.multi_reduction <maximumf>, %47, %cst_21 [1] : vector<8x8xf32> to vector<8xf32>
    %49 = vector.shape_cast %48 : vector<8xf32> to vector<8x1xf32>
    %50 = vector.broadcast %49 : vector<8x1xf32> to vector<8x8xf32>
    %51 = arith.subf %47, %50 : vector<8x8xf32>
    %52 = math.exp %51 : vector<8x8xf32>
    %cst_22 = arith.constant dense<0.000000e+00> : vector<8xf32>
    %53 = vector.multi_reduction <add>, %52, %cst_22 [1] : vector<8x8xf32> to vector<8xf32>
    %54 = vector.shape_cast %53 : vector<8xf32> to vector<8x1xf32>
    %55 = tpu.reciprocal %54 {approx = true} : vector<8x1xf32> -> vector<8x1xf32>
    %56 = vector.broadcast %55 : vector<8x1xf32> to vector<8x8xf32>
    %57 = arith.mulf %52, %56 : vector<8x8xf32>
    %58 = vector.shape_cast %57 : vector<8x8xf32> to vector<8x8x1xf32>
    %59 = vector.broadcast %58 : vector<8x8x1xf32> to vector<8x8x64xf32>
    %60 = arith.mulf %59, %1 : vector<8x8x64xf32>
    %cst_23 = arith.constant dense<0.000000e+00> : vector<8x64xf32>
    %61 = vector.multi_reduction <add>, %60, %cst_23 [1] : vector<8x8x64xf32> to vector<8x64xf32>
    %62 = arith.addf %37, %61 : vector<8x64xf32>
    %c0_24 = arith.constant 0 : index
    %c0_25 = arith.constant 0 : index
    %63 = vector.load %arg8[%c0_24, %c0_25] : memref<64x128xf32, #tpu.memory_space<vmem>>, vector<64x128xf32>
    %cst_26 = arith.constant dense<0.000000e+00> : vector<8x128xf32>
    %64 = tpu.matmul %62, %63, %cst_26 {dimension_numbers = #tpu.dot_dimension_numbers<[1], [0], [0], [1], [0, 0, 1, 1], [], []>} : vector<8x64xf32>, vector<64x128xf32>, vector<8x128xf32> -> vector<8x128xf32>
    %c0_27 = arith.constant 0 : index
    %c0_28 = arith.constant 0 : index
    %65 = vector.load %arg9[%c0_27, %c0_28] : memref<1x128xf32, #tpu.memory_space<vmem>>, vector<1x128xf32>
    %66 = vector.broadcast %65 : vector<1x128xf32> to vector<8x128xf32>
    %67 = arith.addf %64, %66 : vector<8x128xf32>
    %c0_29 = arith.constant 0 : index
    %c0_30 = arith.constant 0 : index
    %68 = vector.load %arg10[%c0_29, %c0_30] : memref<8x128xf32, #tpu.memory_space<vmem>>, vector<8x128xf32>
    tpu.vector_store %arg10[%c0_29, %c0_30], %67 {strides = array<i32>} : memref<8x128xf32, #tpu.memory_space<vmem>>, vector<8x128xf32>,
    return
  }
  func.func @transform_0(%arg0: i32) -> (i32, i32) {
    %c0_i32 = arith.constant 0 : i32
    %c0_i32_0 = arith.constant 0 : i32
    return %arg0, %c0_i32 : i32, i32
  }
  func.func @transform_1(%arg0: i32) -> (i32, i32, i32) {
    %c0_i32 = arith.constant 0 : i32
    %c0_i32_0 = arith.constant 0 : i32
    %c0_i32_1 = arith.constant 0 : i32
    return %arg0, %c0_i32, %c0_i32_0 : i32, i32, i32
  }
  func.func @transform_2(%arg0: i32) -> (i32, i32) {
    %c0_i32 = arith.constant 0 : i32
    %c0_i32_0 = arith.constant 0 : i32
    %c0_i32_1 = arith.constant 0 : i32
    return %c0_i32, %c0_i32_0 : i32, i32
  }
  func.func @transform_3(%arg0: i32) -> (i32, i32) {
    %c0_i32 = arith.constant 0 : i32
    %c0_i32_0 = arith.constant 0 : i32
    %c0_i32_1 = arith.constant 0 : i32
    return %c0_i32, %c0_i32_0 : i32, i32
  }
  func.func @transform_4(%arg0: i32) -> (i32, i32) {
    %c0_i32 = arith.constant 0 : i32
    %c0_i32_0 = arith.constant 0 : i32
    %c0_i32_1 = arith.constant 0 : i32
    return %c0_i32, %c0_i32_0 : i32, i32
  }
  func.func @transform_5(%arg0: i32) -> (i32, i32) {
    %c0_i32 = arith.constant 0 : i32
    %c0_i32_0 = arith.constant 0 : i32
    %c0_i32_1 = arith.constant 0 : i32
    return %c0_i32, %c0_i32_0 : i32, i32
  }
  func.func @transform_6(%arg0: i32) -> (i32, i32) {
    %c0_i32 = arith.constant 0 : i32
    %c0_i32_0 = arith.constant 0 : i32
    %c0_i32_1 = arith.constant 0 : i32
    return %c0_i32, %c0_i32_0 : i32, i32
  }
  func.func @transform_7(%arg0: i32) -> (i32, i32) {
    %c0_i32 = arith.constant 0 : i32
    %c0_i32_0 = arith.constant 0 : i32
    %c0_i32_1 = arith.constant 0 : i32
    return %c0_i32, %c0_i32_0 : i32, i32
  }
  func.func @transform_8(%arg0: i32) -> (i32, i32) {
    %c0_i32 = arith.constant 0 : i32
    %c0_i32_0 = arith.constant 0 : i32
    %c0_i32_1 = arith.constant 0 : i32
    return %c0_i32, %c0_i32_0 : i32, i32
  }
  func.func @transform_9(%arg0: i32) -> (i32, i32) {
    %c0_i32 = arith.constant 0 : i32
    %c0_i32_0 = arith.constant 0 : i32
    return %arg0, %c0_i32 : i32, i32
  }
}

</mosaic_0001>

<llo_original>
// kernel: tpu_custom_call.1
$region0: #{tpu_custom_call.1}
  #allocation0 [shape = 'u32[]', space=smem, size = 0x4, offset = 0x4, fixed_abs, tag = 'smem constant byte address 0x4 - core index']
  #allocation1 [shape = 'u32[72,128]{1,0:T(1,128)}', space=vmem, size = 0x9000, scoped, tag = 'internal scratch']
  %s0 = inlined_call_operand.hbm [shape: f32[16,64], index: 0, kind: input, shape index: {}]
  %s1 = inlined_call_operand.hbm [shape: f32[16,8,64], index: 1, kind: input, shape index: {}]
  %s2 = inlined_call_operand.hbm [shape: f32[64,512], index: 2, kind: input, shape index: {}]
  %s3 = inlined_call_operand.hbm [shape: f32[1,512], index: 3, kind: input, shape index: {}]
  %s4 = inlined_call_operand.hbm [shape: f32[64,1024], index: 4, kind: input, shape index: {}]
  %s5 = inlined_call_operand.vmem [shape: f32[1,512], index: 5, kind: input, shape index: {}]
  %s6 = inlined_call_operand.hbm [shape: f32[1,512], index: 6, kind: input, shape index: {}]
  %s7 = inlined_call_operand.hbm [shape: f32[64,128], index: 7, kind: input, shape index: {}]
  %s8 = inlined_call_operand.vmem [shape: f32[1,128], index: 8, kind: input, shape index: {}]
  %s9 = inlined_call_operand.hbm [shape: f32[16,128], index: 9, kind: output, shape index: {}]
  %s10 = sld [smem:[#allocation0]]
  $region97: #{tpu_custom_call.1} parent=0
    _
  %s12 = ssub.s32 1, %s10
  %s13 = scalar_select 0, %s12, %s10
  $region1: #{tpu_custom_call.1} parent=0
    #allocation2 [shape = 'u8[8192]{0}', space=vmem, size = 0x2000, scoped, tag = 'input window, operand 0']
    #allocation3 [shape = 's32[2]{0}', space=sflag, size = 0x8, scoped, tag = 'scoped memory for tpu_custom_call.1']
    #allocation4 [shape = 's32[2]{0}', space=sflag, size = 0x8, scoped, tag = 'scoped memory for tpu_custom_call.1']
    #allocation5 [shape = 'u8[65536]{0}', space=vmem, size = 0x10000, scoped, tag = 'input window, operand 1']
    #allocation6 [shape = 's32[2]{0}', space=sflag, size = 0x8, scoped, tag = 'scoped memory for tpu_custom_call.1']
    #allocation7 [shape = 'u8[131072]{0}', space=vmem, size = 0x20000, scoped, tag = 'input window, operand 2, single buffered']
    #allocation8 [shape = 'u8[2048]{0}', space=vmem, size = 0x800, scoped, tag = 'input window, operand 3, single buffered']
    #allocation9 [shape = 's32[1]{0}', space=sflag, size = 0x4, scoped, tag = 'scoped memory for tpu_custom_call.1']
    #allocation10 [shape = 'u8[262144]{0}', space=vmem, size = 0x40000, scoped, tag = 'input window, operand 4, single buffered']
    #allocation11 [shape = 'u8[2048]{0}', space=vmem, size = 0x800, scoped, tag = 'input window, operand 6, single buffered']
    #allocation12 [shape = 's32[1]{0}', space=sflag, size = 0x4, scoped, tag = 'scoped memory for tpu_custom_call.1']
    #allocation13 [shape = 'u8[32768]{0}', space=vmem, size = 0x8000, scoped, tag = 'input window, operand 7, single buffered']
    #allocation14 [shape = 'u8[8192]{0}', space=vmem, size = 0x2000, scoped, tag = 'output window, operand 0']
    %14 = vsyncpa [#allocation3], 0
    %s15 = scalar_lea.sflag [#allocation3], 1
    %16 = vsyncpa %s15, 0
    %17 = vsyncpa [#allocation6], 0
    %s18 = scalar_lea.sflag [#allocation6], 1
    %19 = vsyncpa %s18, 0
    %20 = vsyncpa [#allocation9], 0
    %21 = vsyncpa [#allocation12], 0
    %22 = vsyncpa [#allocation4], 0
    %s23 = scalar_lea.sflag [#allocation4], 1
    %24 = vsyncpa %s23, 0
    loop: start=0, step=1, limit=4
    $region2: #{tpu_custom_call.1} parent=1 // loop_pre_header
      _
    $region3: #{tpu_custom_call.1} parent=1 // loop_header
      %s26 = sphi 0, %s30
      %p27 = scmp.ge.s32.totalorder %s26, 4
      %s36 = sphi 0, %s38
      %s39 = sphi 0, %s36
      %s40 = sphi 0, %s39
      %s56 = sphi 0, %s40
      %s62 = sphi 0, %s64
      %s65 = sphi 0, %s62
      %s66 = sphi 0, %s65
      %s82 = sphi 0, %s66
      %s86 = sphi 0, %s86
      %s88 = sphi 0, %s86
      %s89 = sphi 0, %s88
      %s103 = sphi 0, %s89
      %s107 = sphi 0, %s107
      %s109 = sphi 0, %s107
      %s110 = sphi 0, %s109
      %s124 = sphi 0, %s110
      %s128 = sphi 0, %s128
      %s130 = sphi 0, %s128
      %s131 = sphi 0, %s130
      %s145 = sphi 0, %s131
      %s149 = sphi 0, %s149
      %s151 = sphi 0, %s149
      %s152 = sphi 0, %s151
      %s166 = sphi 0, %s152
      %s170 = sphi 0, %s170
      %s172 = sphi 0, %s170
      %s173 = sphi 0, %s172
      %s187 = sphi 0, %s173
      %s191 = sphi 0, %s191
      %s193 = sphi 0, %s191
      %s194 = sphi 0, %s193
      %s208 = sphi 0, %s194
      %s212 = sphi 0, %s212
      %s214 = sphi 0, %s212
      %s215 = sphi 0, %s214
      %s229 = sphi 0, %s215
      %s235 = sphi 0, %s237
      %s238 = sphi 0, %s235
      %s239 = sphi 0, %s238
      %s255 = sphi 0, %s239
    $region4: #{tpu_custom_call.1} parent=1 // loop_header_branch
      %29 = sbr.rel (%p27) target = $region8
    $region5: #{tpu_custom_call.1} parent=1 // loop_body
      %s31 = ssub.s32 %s26, 1
      %s32 = ssub.s32 %s26, 2
      %s33 = sadd.s32 %s26, 1
      %s34 = ssub.s32 %s26, %s33
      %p35 = scmp.eq.s32.totalorder %s34, 0
      %s37 = sadd.s32 %s36, 1
      %s38 = scalar_select %p35, %s36, %s37
      %p41 = pneg %p35
      %p42 = scmp.eq.s32.totalorder %s26, 1
      %p43 = por %p41, %p42
      %p44 = scmp.ne.s32.totalorder %s36, %s39
      %p45 = scmp.eq.s32.totalorder %s26, 0
      %p46 = por %p44, %p45
      %p47 = scmp.ne.s32.totalorder %s36, %s39
      %p48 = scmp.eq.s32.totalorder %s31, 1
      %p49 = por %p47, %p48
      %p50 = scmp.ne.s32.totalorder %s39, %s40
      %p51 = scmp.eq.s32.totalorder %s31, 0
      %p52 = por %p50, %p51
      %p53 = scmp.ne.s32.totalorder %s39, %s40
      %p54 = scmp.eq.s32.totalorder %s32, 1
      %p55 = por %p53, %p54
      %p57 = scmp.ne.s32.totalorder %s40, %s56
      %p58 = scmp.eq.s32.totalorder %s32, 0
      %p59 = por %p57, %p58
      %s60 = ssub.s32 %s26, %s33
      %p61 = scmp.eq.s32.totalorder %s60, 0
      %s63 = sadd.s32 %s62, 1
      %s64 = scalar_select %p61, %s62, %s63
      %p67 = pneg %p61
      %p68 = scmp.eq.s32.totalorder %s26, 1
      %p69 = por %p67, %p68
      %p70 = scmp.ne.s32.totalorder %s62, %s65
      %p71 = scmp.eq.s32.totalorder %s26, 0
      %p72 = por %p70, %p71
      %p73 = scmp.ne.s32.totalorder %s62, %s65
      %p74 = scmp.eq.s32.totalorder %s31, 1
      %p75 = por %p73, %p74
      %p76 = scmp.ne.s32.totalorder %s65, %s66
      %p77 = scmp.eq.s32.totalorder %s31, 0
      %p78 = por %p76, %p77
      %p79 = scmp.ne.s32.totalorder %s65, %s66
      %p80 = scmp.eq.s32.totalorder %s32, 1
      %p81 = por %p79, %p80
      %p83 = scmp.ne.s32.totalorder %s66, %s82
      %p84 = scmp.eq.s32.totalorder %s32, 0
      %p85 = por %p83, %p84
      %s87 = sadd.s32 %s86, 1
      %p90 = scmp.eq.s32.totalorder %s26, 1
      %p91 = scmp.ne.s32.totalorder %s86, %s88
      %p92 = scmp.eq.s32.totalorder %s26, 0
      %p93 = por %p91, %p92
      %p94 = scmp.ne.s32.totalorder %s86, %s88
      %p95 = scmp.eq.s32.totalorder %s31, 1
      %p96 = por %p94, %p95
      %p97 = scmp.ne.s32.totalorder %s88, %s89
      %p98 = scmp.eq.s32.totalorder %s31, 0
      %p99 = por %p97, %p98
      %p100 = scmp.ne.s32.totalorder %s88, %s89
      %p101 = scmp.eq.s32.totalorder %s32, 1
      %p102 = por %p100, %p101
      %p104 = scmp.ne.s32.totalorder %s89, %s103
      %p105 = scmp.eq.s32.totalorder %s32, 0
      %p106 = por %p104, %p105
      %s108 = sadd.s32 %s107, 1
      %p111 = scmp.eq.s32.totalorder %s26, 1
      %p112 = scmp.ne.s32.totalorder %s107, %s109
      %p113 = scmp.eq.s32.totalorder %s26, 0
      %p114 = por %p112, %p113
      %p115 = scmp.ne.s32.totalorder %s107, %s109
      %p116 = scmp.eq.s32.totalorder %s31, 1
      %p117 = por %p115, %p116
      %p118 = scmp.ne.s32.totalorder %s109, %s110
      %p119 = scmp.eq.s32.totalorder %s31, 0
      %p120 = por %p118, %p119
      %p121 = scmp.ne.s32.totalorder %s109, %s110
      %p122 = scmp.eq.s32.totalorder %s32, 1
      %p123 = por %p121, %p122
      %p125 = scmp.ne.s32.totalorder %s110, %s124
      %p126 = scmp.eq.s32.totalorder %s32, 0
      %p127 = por %p125, %p126
      %s129 = sadd.s32 %s128, 1
      %p132 = scmp.eq.s32.totalorder %s26, 1
      %p133 = scmp.ne.s32.totalorder %s128, %s130
      %p134 = scmp.eq.s32.totalorder %s26, 0
      %p135 = por %p133, %p134
      %p136 = scmp.ne.s32.totalorder %s128, %s130
      %p137 = scmp.eq.s32.totalorder %s31, 1
      %p138 = por %p136, %p137
      %p139 = scmp.ne.s32.totalorder %s130, %s131
      %p140 = scmp.eq.s32.totalorder %s31, 0
      %p141 = por %p139, %p140
      %p142 = scmp.ne.s32.totalorder %s130, %s131
      %p143 = scmp.eq.s32.totalorder %s32, 1
      %p144 = por %p142, %p143
      %p146 = scmp.ne.s32.totalorder %s131, %s145
      %p147 = scmp.eq.s32.totalorder %s32, 0
      %p148 = por %p146, %p147
      %s150 = sadd.s32 %s149, 1
      %p153 = scmp.eq.s32.totalorder %s26, 1
      %p154 = scmp.ne.s32.totalorder %s149, %s151
      %p155 = scmp.eq.s32.totalorder %s26, 0
      %p156 = por %p154, %p155
      %p157 = scmp.ne.s32.totalorder %s149, %s151
      %p158 = scmp.eq.s32.totalorder %s31, 1
      %p159 = por %p157, %p158
      %p160 = scmp.ne.s32.totalorder %s151, %s152
      %p161 = scmp.eq.s32.totalorder %s31, 0
      %p162 = por %p160, %p161
      %p163 = scmp.ne.s32.totalorder %s151, %s152
      %p164 = scmp.eq.s32.totalorder %s32, 1
      %p165 = por %p163, %p164
      %p167 = scmp.ne.s32.totalorder %s152, %s166
      %p168 = scmp.eq.s32.totalorder %s32, 0
      %p169 = por %p167, %p168
      %s171 = sadd.s32 %s170, 1
      %p174 = scmp.eq.s32.totalorder %s26, 1
      %p175 = scmp.ne.s32.totalorder %s170, %s172
      %p176 = scmp.eq.s32.totalorder %s26, 0
      %p177 = por %p175, %p176
      %p178 = scmp.ne.s32.totalorder %s170, %s172
      %p179 = scmp.eq.s32.totalorder %s31, 1
      %p180 = por %p178, %p179
      %p181 = scmp.ne.s32.totalorder %s172, %s173
      %p182 = scmp.eq.s32.totalorder %s31, 0
      %p183 = por %p181, %p182
      %p184 = scmp.ne.s32.totalorder %s172, %s173
      %p185 = scmp.eq.s32.totalorder %s32, 1
      %p186 = por %p184, %p185
      %p188 = scmp.ne.s32.totalorder %s173, %s187
      %p189 = scmp.eq.s32.totalorder %s32, 0
      %p190 = por %p188, %p189
      %s192 = sadd.s32 %s191, 1
      %p195 = scmp.eq.s32.totalorder %s26, 1
      %p196 = scmp.ne.s32.totalorder %s191, %s193
      %p197 = scmp.eq.s32.totalorder %s26, 0
      %p198 = por %p196, %p197
      %p199 = scmp.ne.s32.totalorder %s191, %s193
      %p200 = scmp.eq.s32.totalorder %s31, 1
      %p201 = por %p199, %p200
      %p202 = scmp.ne.s32.totalorder %s193, %s194
      %p203 = scmp.eq.s32.totalorder %s31, 0
      %p204 = por %p202, %p203
      %p205 = scmp.ne.s32.totalorder %s193, %s194
      %p206 = scmp.eq.s32.totalorder %s32, 1
      %p207 = por %p205, %p206
      %p209 = scmp.ne.s32.totalorder %s194, %s208
      %p210 = scmp.eq.s32.totalorder %s32, 0
      %p211 = por %p209, %p210
      %s213 = sadd.s32 %s212, 1
      %p216 = scmp.eq.s32.totalorder %s26, 1
      %p217 = scmp.ne.s32.totalorder %s212, %s214
      %p218 = scmp.eq.s32.totalorder %s26, 0
      %p219 = por %p217, %p218
      %p220 = scmp.ne.s32.totalorder %s212, %s214
      %p221 = scmp.eq.s32.totalorder %s31, 1
      %p222 = por %p220, %p221
      %p223 = scmp.ne.s32.totalorder %s214, %s215
      %p224 = scmp.eq.s32.totalorder %s31, 0
      %p225 = por %p223, %p224
      %p226 = scmp.ne.s32.totalorder %s214, %s215
      %p227 = scmp.eq.s32.totalorder %s32, 1
      %p228 = por %p226, %p227
      %p230 = scmp.ne.s32.totalorder %s215, %s229
      %p231 = scmp.eq.s32.totalorder %s32, 0
      %p232 = por %p230, %p231
      %s233 = ssub.s32 %s26, %s33
      %p234 = scmp.eq.s32.totalorder %s233, 0
      %s236 = sadd.s32 %s235, 1
      %s237 = scalar_select %p234, %s235, %s236
      %p240 = pneg %p234
      %p241 = scmp.eq.s32.totalorder %s26, 1
      %p242 = por %p240, %p241
      %p243 = scmp.ne.s32.totalorder %s235, %s238
      %p244 = scmp.eq.s32.totalorder %s26, 0
      %p245 = por %p243, %p244
      %p246 = scmp.ne.s32.totalorder %s235, %s238
      %p247 = scmp.eq.s32.totalorder %s31, 1
      %p248 = por %p246, %p247
      %p249 = scmp.ne.s32.totalorder %s238, %s239
      %p250 = scmp.eq.s32.totalorder %s31, 0
      %p251 = por %p249, %p250
      %p252 = scmp.ne.s32.totalorder %s238, %s239
      %p253 = scmp.eq.s32.totalorder %s32, 1
      %p254 = por %p252, %p253
      %p256 = scmp.ne.s32.totalorder %s239, %s255
      %p257 = scmp.eq.s32.totalorder %s32, 0
      %p258 = por %p256, %p257
      %p259 = scmp.le.s32.totalorder 1, %s26
      %p260 = scmp.lt.s32.totalorder %s26, 3
      %p261 = pnand %p259, %p260
      %p262 = pneg %p261
      // Predicated region
      $region9: #{tpu_custom_call.1} parent=5 // pred_check
        _
      $region10: #{tpu_custom_call.1} parent=5 // pred_check_branch
        %264 = sbr.rel (%p261) target = $region12
      $region11: #{tpu_custom_call.1} parent=5 // pred_region
        %s265 = ssub.s32 %s26, 1
        // Predicated region
        $region13: #{tpu_custom_call.1} parent=11 // pred_check
          %p266 = pneg %p99
        $region14: #{tpu_custom_call.1} parent=11 // pred_check_branch
          %268 = sbr.rel (%p266) target = $region16
        $region15: #{tpu_custom_call.1} parent=11 // pred_region
          %270 = vsyncadd [#allocation6], 0
          %s271 = sshll.u32 %s2, 4
          %s272 = int_to_ptr.hbm [resolvable:$true] %s271
          %s273 = sshll.u32 [#allocation7], 4
          %s274 = int_to_ptr.vmem [resolvable:$true] %s273
          %279 = dma.hbm_to_vmem [thread:$0]  %s272, 4096, %s274, [#allocation6], 512, 512, 32
        $region16: #{tpu_custom_call.1} parent=11 // pred_fallthru
          _
        // Predicated region
        $region17: #{tpu_custom_call.1} parent=11 // pred_check
          %p280 = pneg %p120
        $region18: #{tpu_custom_call.1} parent=11 // pred_check_branch
          %282 = sbr.rel (%p280) target = $region20
        $region19: #{tpu_custom_call.1} parent=11 // pred_region
          %284 = vsyncadd [#allocation9], 0
          %s286 = sshll.u32 %s3, 4
          %s287 = int_to_ptr.hbm [resolvable:$true] %s286
          %s288 = sshll.u32 [#allocation8], 4
          %s289 = int_to_ptr.vmem [resolvable:$true] %s288
          %291 = dma.hbm_to_vmem [thread:$0]  %s287, 64, %s289, [#allocation9]
        $region20: #{tpu_custom_call.1} parent=11 // pred_fallthru
          _
        // Predicated region
        $region21: #{tpu_custom_call.1} parent=11 // pred_check
          %p292 = pneg %p141
        $region22: #{tpu_custom_call.1} parent=11 // pred_check_branch
          %294 = sbr.rel (%p292) target = $region24
        $region23: #{tpu_custom_call.1} parent=11 // pred_region
          %296 = vsyncadd [#allocation9], 0
          %s297 = sshll.u32 %s4, 4
          %s298 = int_to_ptr.hbm [resolvable:$true] %s297
          %s299 = sshll.u32 [#allocation10], 4
          %s300 = int_to_ptr.vmem [resolvable:$true] %s299
          %305 = dma.hbm_to_vmem [thread:$0]  %s298, 8192, %s300, [#allocation9], 1024, 1024, 64
        $region24: #{tpu_custom_call.1} parent=11 // pred_fallthru
          _
        // Predicated region
        $region25: #{tpu_custom_call.1} parent=11 // pred_check
          %p306 = pneg %p162
        $region26: #{tpu_custom_call.1} parent=11 // pred_check_branch
          %308 = sbr.rel (%p306) target = $region28
        $region27: #{tpu_custom_call.1} parent=11 // pred_region
          _
        $region28: #{tpu_custom_call.1} parent=11 // pred_fallthru
          _
        // Predicated region
        $region29: #{tpu_custom_call.1} parent=11 // pred_check
          %p309 = pneg %p183
        $region30: #{tpu_custom_call.1} parent=11 // pred_check_branch
          %311 = sbr.rel (%p309) target = $region32
        $region31: #{tpu_custom_call.1} parent=11 // pred_region
          %313 = vsyncadd [#allocation12], 0
          %s315 = sshll.u32 %s6, 4
          %s316 = int_to_ptr.hbm [resolvable:$true] %s315
          %s317 = sshll.u32 [#allocation11], 4
          %s318 = int_to_ptr.vmem [resolvable:$true] %s317
          %320 = dma.hbm_to_vmem [thread:$0]  %s316, 64, %s318, [#allocation12]
        $region32: #{tpu_custom_call.1} parent=11 // pred_fallthru
          _
        // Predicated region
        $region33: #{tpu_custom_call.1} parent=11 // pred_check
          %p321 = pneg %p204
        $region34: #{tpu_custom_call.1} parent=11 // pred_check_branch
          %323 = sbr.rel (%p321) target = $region36
        $region35: #{tpu_custom_call.1} parent=11 // pred_region
          %325 = vsyncadd [#allocation12], 0
          %s326 = sshll.u32 %s7, 4
          %s327 = int_to_ptr.hbm [resolvable:$true] %s326
          %s328 = sshll.u32 [#allocation13], 4
          %s329 = int_to_ptr.vmem [resolvable:$true] %s328
          %334 = dma.hbm_to_vmem [thread:$0]  %s327, 1024, %s329, [#allocation12], 128, 128, 8
        $region36: #{tpu_custom_call.1} parent=11 // pred_fallthru
          _
        // Predicated region
        $region37: #{tpu_custom_call.1} parent=11 // pred_check
          %p335 = pneg %p225
        $region38: #{tpu_custom_call.1} parent=11 // pred_check_branch
          %337 = sbr.rel (%p335) target = $region40
        $region39: #{tpu_custom_call.1} parent=11 // pred_region
          _
        $region40: #{tpu_custom_call.1} parent=11 // pred_fallthru
          _
      $region12: #{tpu_custom_call.1} parent=5 // pred_fallthru
        _
      %p338 = scmp.lt.s32.totalorder %s26, 2
      // Predicated region
      $region41: #{tpu_custom_call.1} parent=5 // pred_check
        %p339 = pneg %p338
      $region42: #{tpu_custom_call.1} parent=5 // pred_check_branch
        %341 = sbr.rel (%p339) target = $region44
      $region43: #{tpu_custom_call.1} parent=5 // pred_region
        // Predicated region
        $region45: #{tpu_custom_call.1} parent=43 // pred_check
          %p342 = pneg %p46
        $region46: #{tpu_custom_call.1} parent=43 // pred_check_branch
          %344 = sbr.rel (%p342) target = $region48
        $region47: #{tpu_custom_call.1} parent=43 // pred_region
          %s345 = sand.u32 %s36, 1
          %s346 = scalar_lea.sflag [#allocation3], %s345
          %s347 = sand.u32 %s36, 1
          %s348 = smul.addr %s347, 8
          %s349 = scalar_lea.vmem [#allocation2], %s348
          %351 = vsyncadd %s346, 0
          %s352 = smul.addr %s26, 8
          %s353 = scalar_lea.hbm %s0, %s352
          %s355 = sshll.u32 %s353, 4
          %s356 = int_to_ptr.hbm [resolvable:$true] %s355
          %s357 = sshll.u32 %s349, 4
          %s358 = int_to_ptr.vmem [resolvable:$true] %s357
          %360 = dma.hbm_to_vmem [thread:$0]  %s356, 128, %s358, %s346
        $region48: #{tpu_custom_call.1} parent=43 // pred_fallthru
          _
        // Predicated region
        $region49: #{tpu_custom_call.1} parent=43 // pred_check
          %p361 = pneg %p72
        $region50: #{tpu_custom_call.1} parent=43 // pred_check_branch
          %363 = sbr.rel (%p361) target = $region52
        $region51: #{tpu_custom_call.1} parent=43 // pred_region
          %s364 = sand.u32 %s26, 1
          %s365 = scalar_lea.sflag [#allocation6], %s364
          %s366 = sand.u32 %s62, 1
          %s367 = smul.addr %s366, 64
          %s368 = scalar_lea.vmem [#allocation5], %s367
          %s369 = smul.u32 8, %s26
          %371 = vsyncadd %s365, 0
          %s372 = smul.addr %s369, 8
          %s373 = scalar_lea.hbm %s1, %s372
          %s374 = sshll.u32 %s373, 4
          %s375 = int_to_ptr.hbm [resolvable:$true] %s374
          %s376 = sshll.u32 %s368, 4
          %s377 = int_to_ptr.vmem [resolvable:$true] %s376
          %382 = dma.hbm_to_vmem [thread:$0]  %s375, 1024, %s377, %s365, 128, 128, 8
        $region52: #{tpu_custom_call.1} parent=43 // pred_fallthru
          _
      $region44: #{tpu_custom_call.1} parent=5 // pred_fallthru
        _
      %p383 = scmp.le.s32.totalorder 1, %s26
      %p384 = scmp.lt.s32.totalorder %s26, 3
      %p385 = pnand %p383, %p384
      %p386 = pneg %p385
      // Predicated region
      $region53: #{tpu_custom_call.1} parent=5 // pred_check
        _
      $region54: #{tpu_custom_call.1} parent=5 // pred_check_branch
        %388 = sbr.rel (%p385) target = $region56
      $region55: #{tpu_custom_call.1} parent=5 // pred_region
        %s389 = ssub.s32 %s26, 1
        %s390 = sand.u32 %s39, 1
        %s391 = scalar_lea.sflag [#allocation3], %s390
        %s392 = sand.u32 %s39, 1
        %s393 = smul.addr %s392, 8
        %s394 = scalar_lea.vmem [#allocation2], %s393
        // Predicated region
        $region57: #{tpu_custom_call.1} parent=55 // pred_check
          %p395 = pneg %p52
        $region58: #{tpu_custom_call.1} parent=55 // pred_check_branch
          %397 = sbr.rel (%p395) target = $region60
        $region59: #{tpu_custom_call.1} parent=55 // pred_region
          %399 = dma.done %s391, 128
        $region60: #{tpu_custom_call.1} parent=55 // pred_fallthru
          _
        %s400 = sand.u32 %s31, 1
        %s401 = scalar_lea.sflag [#allocation6], %s400
        %s402 = sand.u32 %s65, 1
        %s403 = smul.addr %s402, 64
        %s404 = scalar_lea.vmem [#allocation5], %s403
        // Predicated region
        $region61: #{tpu_custom_call.1} parent=55 // pred_check
          %p405 = pneg %p78
        $region62: #{tpu_custom_call.1} parent=55 // pred_check_branch
          %407 = sbr.rel (%p405) target = $region64
        $region63: #{tpu_custom_call.1} parent=55 // pred_region
          %409 = dma.done %s401, 1024
        $region64: #{tpu_custom_call.1} parent=55 // pred_fallthru
          _
        // Predicated region
        $region65: #{tpu_custom_call.1} parent=55 // pred_check
          %p410 = pneg %p99
        $region66: #{tpu_custom_call.1} parent=55 // pred_check_branch
          %412 = sbr.rel (%p410) target = $region68
        $region67: #{tpu_custom_call.1} parent=55 // pred_region
          %414 = dma.done [#allocation6], 4096
        $region68: #{tpu_custom_call.1} parent=55 // pred_fallthru
          _
        // Predicated region
        $region69: #{tpu_custom_call.1} parent=55 // pred_check
          %p415 = pneg %p120
        $region70: #{tpu_custom_call.1} parent=55 // pred_check_branch
          %417 = sbr.rel (%p415) target = $region72
        $region71: #{tpu_custom_call.1} parent=55 // pred_region
          %419 = dma.done [#allocation9], 64
        $region72: #{tpu_custom_call.1} parent=55 // pred_fallthru
          _
        // Predicated region
        $region73: #{tpu_custom_call.1} parent=55 // pred_check
          %p420 = pneg %p141
        $region74: #{tpu_custom_call.1} parent=55 // pred_check_branch
          %422 = sbr.rel (%p420) target = $region76
        $region75: #{tpu_custom_call.1} parent=55 // pred_region
          %424 = dma.done [#allocation9], 8192
        $region76: #{tpu_custom_call.1} parent=55 // pred_fallthru
          _
        // Predicated region
        $region77: #{tpu_custom_call.1} parent=55 // pred_check
          %p425 = pneg %p183
        $region78: #{tpu_custom_call.1} parent=55 // pred_check_branch
          %427 = sbr.rel (%p425) target = $region80
        $region79: #{tpu_custom_call.1} parent=55 // pred_region
          %429 = dma.done [#allocation12], 64
        $region80: #{tpu_custom_call.1} parent=55 // pred_fallthru
          _
        // Predicated region
        $region81: #{tpu_custom_call.1} parent=55 // pred_check
          %p430 = pneg %p204
        $region82: #{tpu_custom_call.1} parent=55 // pred_check_branch
          %432 = sbr.rel (%p430) target = $region84
        $region83: #{tpu_custom_call.1} parent=55 // pred_region
          %434 = dma.done [#allocation12], 1024
        $region84: #{tpu_custom_call.1} parent=55 // pred_fallthru
          _
        %s435 = sand.u32 %s39, 1
        %s436 = scalar_lea.sflag [#allocation3], %s435
        %s437 = sand.u32 %s39, 1
        %s438 = smul.addr %s437, 8
        %s439 = scalar_lea.vmem [#allocation2], %s438
        %p440 = pneg %p52
        %p441 = pneg %p49
        %s442 = sand.u32 %s31, 1
        %s443 = scalar_lea.sflag [#allocation6], %s442
        %s444 = sand.u32 %s65, 1
        %s445 = smul.addr %s444, 64
        %s446 = scalar_lea.vmem [#allocation5], %s445
        %p447 = pneg %p78
        %p448 = pneg %p75
        %p449 = pneg %p99
        %p450 = pneg %p96
        %p451 = pneg %p120
        %p452 = pneg %p117
        %p453 = pneg %p141
        %p454 = pneg %p138
        %p455 = pneg %p162
        %p456 = pneg %p159
        %p457 = pneg %p183
        %p458 = pneg %p180
        %p459 = pneg %p204
        %p460 = pneg %p201
        %p461 = pneg %p225
        %p462 = pneg %p222
        %p463 = pneg %p251
        %p464 = pneg %p248
        %s465 = sand.u32 %s238, 1
        %s466 = scalar_lea.sflag [#allocation4], %s465
        %s467 = sand.u32 %s238, 1
        %s468 = smul.addr %s467, 8
        %s469 = scalar_lea.vmem [#allocation14], %s468
        %s470 = smul.u32 8, %s31
        %v471 = vld [vmem:[%s394] sm:$0xff]
        %v472 = vld [vmem:[%s404] sm:$0xff]
        %v473 = vld [vmem:[%s404 + $0x8] sm:$0xff]
        %v474 = vld [vmem:[%s404 + $0x10] sm:$0xff]
        %v475 = vld [vmem:[%s404 + $0x18] sm:$0xff]
        %v476 = vld [vmem:[%s404 + $0x20] sm:$0xff]
        %v477 = vld [vmem:[%s404 + $0x28] sm:$0xff]
        %v478 = vld [vmem:[%s404 + $0x30] sm:$0xff]
        %v479 = vld [vmem:[%s404 + $0x38] sm:$0xff]
        %v480 = vld [vmem:[#allocation10] sm:$0xff]
        %v481 = vld [vmem:[#allocation10 + $0x8] sm:$0xff]
        %v482 = vld [vmem:[#allocation10 + $0x10] sm:$0xff]
        %v483 = vld [vmem:[#allocation10 + $0x18] sm:$0xff]
        %v484 = vld [vmem:[#allocation10 + $0x20] sm:$0xff]
        %v485 = vld [vmem:[#allocation10 + $0x28] sm:$0xff]
        %v486 = vld [vmem:[#allocation10 + $0x30] sm:$0xff]
        %v487 = vld [vmem:[#allocation10 + $0x38] sm:$0xff]
        %v488 = vld [vmem:[#allocation10 + $0x40] sm:$0xff]
        %v489 = vld [vmem:[#allocation10 + $0x48] sm:$0xff]
        %v490 = vld [vmem:[#allocation10 + $0x50] sm:$0xff]
        %v491 = vld [vmem:[#allocation10 + $0x58] sm:$0xff]
        %v492 = vld [vmem:[#allocation10 + $0x60] sm:$0xff]
        %v493 = vld [vmem:[#allocation10 + $0x68] sm:$0xff]
        %v494 = vld [vmem:[#allocation10 + $0x70] sm:$0xff]
        %v495 = vld [vmem:[#allocation10 + $0x78] sm:$0xff]
        %v496 = vld [vmem:[#allocation10 + $0x80] sm:$0xff]
        %v497 = vld [vmem:[#allocation10 + $0x88] sm:$0xff]
        %v498 = vld [vmem:[#allocation10 + $0x90] sm:$0xff]
        %v499 = vld [vmem:[#allocation10 + $0x98] sm:$0xff]
        %v500 = vld [vmem:[#allocation10 + $0xa0] sm:$0xff]
        %v501 = vld [vmem:[#allocation10 + $0xa8] sm:$0xff]
        %v502 = vld [vmem:[#allocation10 + $0xb0] sm:$0xff]
        %v503 = vld [vmem:[#allocation10 + $0xb8] sm:$0xff]
        %v504 = vld [vmem:[#allocation10 + $0xc0] sm:$0xff]
        %v505 = vld [vmem:[#allocation10 + $0xc8] sm:$0xff]
        %v506 = vld [vmem:[#allocation10 + $0xd0] sm:$0xff]
        %v507 = vld [vmem:[#allocation10 + $0xd8] sm:$0xff]
        %v508 = vld [vmem:[#allocation10 + $0xe0] sm:$0xff]
        %v509 = vld [vmem:[#allocation10 + $0xe8] sm:$0xff]
        %v510 = vld [vmem:[#allocation10 + $0xf0] sm:$0xff]
        %v511 = vld [vmem:[#allocation10 + $0xf8] sm:$0xff]
        %v512 = vld [vmem:[#allocation10 + $0x100] sm:$0xff]
        %v513 = vld [vmem:[#allocation10 + $0x108] sm:$0xff]
        %v514 = vld [vmem:[#allocation10 + $0x110] sm:$0xff]
        %v515 = vld [vmem:[#allocation10 + $0x118] sm:$0xff]
        %v516 = vld [vmem:[#allocation10 + $0x120] sm:$0xff]
        %v517 = vld [vmem:[#allocation10 + $0x128] sm:$0xff]
        %v518 = vld [vmem:[#allocation10 + $0x130] sm:$0xff]
        %v519 = vld [vmem:[#allocation10 + $0x138] sm:$0xff]
        %v520 = vld [vmem:[#allocation10 + $0x140] sm:$0xff]
        %v521 = vld [vmem:[#allocation10 + $0x148] sm:$0xff]
        %v522 = vld [vmem:[#allocation10 + $0x150] sm:$0xff]
        %v523 = vld [vmem:[#allocation10 + $0x158] sm:$0xff]
        %v524 = vld [vmem:[#allocation10 + $0x160] sm:$0xff]
        %v525 = vld [vmem:[#allocation10 + $0x168] sm:$0xff]
        %v526 = vld [vmem:[#allocation10 + $0x170] sm:$0xff]
        %v527 = vld [vmem:[#allocation10 + $0x178] sm:$0xff]
        %v528 = vld [vmem:[#allocation10 + $0x180] sm:$0xff]
        %v529 = vld [vmem:[#allocation10 + $0x188] sm:$0xff]
        %v530 = vld [vmem:[#allocation10 + $0x190] sm:$0xff]
        %v531 = vld [vmem:[#allocation10 + $0x198] sm:$0xff]
        %v532 = vld [vmem:[#allocation10 + $0x1a0] sm:$0xff]
        %v533 = vld [vmem:[#allocation10 + $0x1a8] sm:$0xff]
        %v534 = vld [vmem:[#allocation10 + $0x1b0] sm:$0xff]
        %v535 = vld [vmem:[#allocation10 + $0x1b8] sm:$0xff]
        %v536 = vld [vmem:[#allocation10 + $0x1c0] sm:$0xff]
        %v537 = vld [vmem:[#allocation10 + $0x1c8] sm:$0xff]
        %v538 = vld [vmem:[#allocation10 + $0x1d0] sm:$0xff]
        %v539 = vld [vmem:[#allocation10 + $0x1d8] sm:$0xff]
        %v540 = vld [vmem:[#allocation10 + $0x1e0] sm:$0xff]
        %v541 = vld [vmem:[#allocation10 + $0x1e8] sm:$0xff]
        %v542 = vld [vmem:[#allocation10 + $0x1f0] sm:$0xff]
        %v543 = vld [vmem:[#allocation10 + $0x1f8] sm:$0xff]
        %v544 = vld [vmem:[%s5] sm:$0xf]
        %v545 = vld [vmem:[#allocation11] sm:$0xf]
        %vm546 = vcmask 523264
        %v548 = vsel %vm546, %v472, 0
        %v551 = vsel %vm546, %v473, 0
        %v554 = vsel %vm546, %v474, 0
        %v557 = vsel %vm546, %v475, 0
        %v560 = vsel %vm546, %v476, 0
        %v563 = vsel %vm546, %v477, 0
        %v566 = vsel %vm546, %v478, 0
        %v569 = vsel %vm546, %v479, 0
        %571 = vmatpush.msra.mxu0 0.0
        %572 = vmatpush.msra.mxu0 0.0
        %573 = vmatpush.msra.mxu0 0.0
        %574 = vmatpush.msra.mxu0 0.0
        %575 = vmatpush.msra.mxu0 0.0
        %576 = vmatpush.msra.mxu0 0.0
        %577 = vmatpush.msra.mxu0 0.0
        %578 = vmatpush.msra.mxu0 0.0
        %579 = vmatpush.msra.mxu0 %v536
        %580 = vmatpush.msra.mxu0 %v528
        %581 = vmatpush.msra.mxu0 %v520
        %582 = vmatpush.msra.mxu0 %v512
        %583 = vmatpush.msra.mxu0 %v504
        %584 = vmatpush.msra.mxu0 %v496
        %585 = vmatpush.msra.mxu0 %v488
        %586 = vmatpush.msra.mxu0 %v480
        %587 = vmatmul.f32.gmra.mxu0 %v548
        %v588 = vpop.f32.mrf.mxu0
        %v589 = vadd.f32 0.0, %v588
        %590 = vmatmul.f32.gmra.mxu0 %v551
        %v591 = vpop.f32.mrf.mxu0
        %v592 = vadd.f32 0.0, %v591
        %593 = vmatmul.f32.gmra.mxu0 %v554
        %v594 = vpop.f32.mrf.mxu0
        %v595 = vadd.f32 0.0, %v594
        %596 = vmatmul.f32.gmra.mxu0 %v557
        %v597 = vpop.f32.mrf.mxu0
        %v598 = vadd.f32 0.0, %v597
        %599 = vmatmul.f32.gmra.mxu0 %v560
        %v600 = vpop.f32.mrf.mxu0
        %v601 = vadd.f32 0.0, %v600
        %602 = vmatmul.f32.gmra.mxu0 %v563
        %v603 = vpop.f32.mrf.mxu0
        %v604 = vadd.f32 0.0, %v603
        %605 = vmatmul.f32.gmra.mxu0 %v566
        %v606 = vpop.f32.mrf.mxu0
        %v607 = vadd.f32 0.0, %v606
        %608 = vmatmul.f32.gmra.mxu0 %v569
        %v609 = vpop.f32.mrf.mxu0
        %v610 = vadd.f32 0.0, %v609
        %611 = vdwg.mxu0
        %612 = vmatpush.msra.mxu0 0.0
        %613 = vmatpush.msra.mxu0 0.0
        %614 = vmatpush.msra.mxu0 0.0
        %615 = vmatpush.msra.mxu0 0.0
        %616 = vmatpush.msra.mxu0 0.0
        %617 = vmatpush.msra.mxu0 0.0
        %618 = vmatpush.msra.mxu0 0.0
        %619 = vmatpush.msra.mxu0 0.0
        %620 = vmatpush.msra.mxu0 %v537
        %621 = vmatpush.msra.mxu0 %v529
        %622 = vmatpush.msra.mxu0 %v521
        %623 = vmatpush.msra.mxu0 %v513
        %624 = vmatpush.msra.mxu0 %v505
        %625 = vmatpush.msra.mxu0 %v497
        %626 = vmatpush.msra.mxu0 %v489
        %627 = vmatpush.msra.mxu0 %v481
        %628 = vmatmul.f32.gmra.mxu0 %v548
        %v629 = vpop.f32.mrf.mxu0
        %v630 = vadd.f32 0.0, %v629
        %631 = vmatmul.f32.gmra.mxu0 %v551
        %v632 = vpop.f32.mrf.mxu0
        %v633 = vadd.f32 0.0, %v632
        %634 = vmatmul.f32.gmra.mxu0 %v554
        %v635 = vpop.f32.mrf.mxu0
        %v636 = vadd.f32 0.0, %v635
        %637 = vmatmul.f32.gmra.mxu0 %v557
        %v638 = vpop.f32.mrf.mxu0
        %v639 = vadd.f32 0.0, %v638
        %640 = vmatmul.f32.gmra.mxu0 %v560
        %v641 = vpop.f32.mrf.mxu0
        %v642 = vadd.f32 0.0, %v641
        %643 = vmatmul.f32.gmra.mxu0 %v563
        %v644 = vpop.f32.mrf.mxu0
        %v645 = vadd.f32 0.0, %v644
        %646 = vmatmul.f32.gmra.mxu0 %v566
        %v647 = vpop.f32.mrf.mxu0
        %v648 = vadd.f32 0.0, %v647
        %649 = vmatmul.f32.gmra.mxu0 %v569
        %v650 = vpop.f32.mrf.mxu0
        %v651 = vadd.f32 0.0, %v650
        %652 = vdwg.mxu0
        %653 = vmatpush.msra.mxu0 0.0
        %654 = vmatpush.msra.mxu0 0.0
        %655 = vmatpush.msra.mxu0 0.0
        %656 = vmatpush.msra.mxu0 0.0
        %657 = vmatpush.msra.mxu0 0.0
        %658 = vmatpush.msra.mxu0 0.0
        %659 = vmatpush.msra.mxu0 0.0
        %660 = vmatpush.msra.mxu0 0.0
        %661 = vmatpush.msra.mxu0 %v538
        %662 = vmatpush.msra.mxu0 %v530
        %663 = vmatpush.msra.mxu0 %v522
        %664 = vmatpush.msra.mxu0 %v514
        %665 = vmatpush.msra.mxu0 %v506
        %666 = vmatpush.msra.mxu0 %v498
        %667 = vmatpush.msra.mxu0 %v490
        %668 = vmatpush.msra.mxu0 %v482
        %669 = vmatmul.f32.gmra.mxu0 %v548
        %v670 = vpop.f32.mrf.mxu0
        %v671 = vadd.f32 0.0, %v670
        %672 = vmatmul.f32.gmra.mxu0 %v551
        %v673 = vpop.f32.mrf.mxu0
        %v674 = vadd.f32 0.0, %v673
        %675 = vmatmul.f32.gmra.mxu0 %v554
        %v676 = vpop.f32.mrf.mxu0
        %v677 = vadd.f32 0.0, %v676
        %678 = vmatmul.f32.gmra.mxu0 %v557
        %v679 = vpop.f32.mrf.mxu0
        %v680 = vadd.f32 0.0, %v679
        %681 = vmatmul.f32.gmra.mxu0 %v560
        %v682 = vpop.f32.mrf.mxu0
        %v683 = vadd.f32 0.0, %v682
        %684 = vmatmul.f32.gmra.mxu0 %v563
        %v685 = vpop.f32.mrf.mxu0
        %v686 = vadd.f32 0.0, %v685
        %687 = vmatmul.f32.gmra.mxu0 %v566
        %v688 = vpop.f32.mrf.mxu0
        %v689 = vadd.f32 0.0, %v688
        %690 = vmatmul.f32.gmra.mxu0 %v569
        %v691 = vpop.f32.mrf.mxu0
        %v692 = vadd.f32 0.0, %v691
        %693 = vdwg.mxu0
        %694 = vmatpush.msra.mxu0 0.0
        %695 = vmatpush.msra.mxu0 0.0
        %696 = vmatpush.msra.mxu0 0.0
        %697 = vmatpush.msra.mxu0 0.0
        %698 = vmatpush.msra.mxu0 0.0
        %699 = vmatpush.msra.mxu0 0.0
        %700 = vmatpush.msra.mxu0 0.0
        %701 = vmatpush.msra.mxu0 0.0
        %702 = vmatpush.msra.mxu0 %v539
        %703 = vmatpush.msra.mxu0 %v531
        %704 = vmatpush.msra.mxu0 %v523
        %705 = vmatpush.msra.mxu0 %v515
        %706 = vmatpush.msra.mxu0 %v507
        %707 = vmatpush.msra.mxu0 %v499
        %708 = vmatpush.msra.mxu0 %v491
        %709 = vmatpush.msra.mxu0 %v483
        %710 = vmatmul.f32.gmra.mxu0 %v548
        %v711 = vpop.f32.mrf.mxu0
        %v712 = vadd.f32 0.0, %v711
        %713 = vmatmul.f32.gmra.mxu0 %v551
        %v714 = vpop.f32.mrf.mxu0
        %v715 = vadd.f32 0.0, %v714
        %716 = vmatmul.f32.gmra.mxu0 %v554
        %v717 = vpop.f32.mrf.mxu0
        %v718 = vadd.f32 0.0, %v717
        %719 = vmatmul.f32.gmra.mxu0 %v557
        %v720 = vpop.f32.mrf.mxu0
        %v721 = vadd.f32 0.0, %v720
        %722 = vmatmul.f32.gmra.mxu0 %v560
        %v723 = vpop.f32.mrf.mxu0
        %v724 = vadd.f32 0.0, %v723
        %725 = vmatmul.f32.gmra.mxu0 %v563
        %v726 = vpop.f32.mrf.mxu0
        %v727 = vadd.f32 0.0, %v726
        %728 = vmatmul.f32.gmra.mxu0 %v566
        %v729 = vpop.f32.mrf.mxu0
        %v730 = vadd.f32 0.0, %v729
        %731 = vmatmul.f32.gmra.mxu0 %v569
        %v732 = vpop.f32.mrf.mxu0
        %v733 = vadd.f32 0.0, %v732
        %734 = vdwg.mxu0
        %735 = vmatpush.msra.mxu0 0.0
        %736 = vmatpush.msra.mxu0 0.0
        %737 = vmatpush.msra.mxu0 0.0
        %738 = vmatpush.msra.mxu0 0.0
        %739 = vmatpush.msra.mxu0 0.0
        %740 = vmatpush.msra.mxu0 0.0
        %741 = vmatpush.msra.mxu0 0.0
        %742 = vmatpush.msra.mxu0 0.0
        %743 = vmatpush.msra.mxu0 %v540
        %744 = vmatpush.msra.mxu0 %v532
        %745 = vmatpush.msra.mxu0 %v524
        %746 = vmatpush.msra.mxu0 %v516
        %747 = vmatpush.msra.mxu0 %v508
        %748 = vmatpush.msra.mxu0 %v500
        %749 = vmatpush.msra.mxu0 %v492
        %750 = vmatpush.msra.mxu0 %v484
        %751 = vmatmul.f32.gmra.mxu0 %v548
        %v752 = vpop.f32.mrf.mxu0
        %v753 = vadd.f32 0.0, %v752
        %754 = vmatmul.f32.gmra.mxu0 %v551
        %v755 = vpop.f32.mrf.mxu0
        %v756 = vadd.f32 0.0, %v755
        %757 = vmatmul.f32.gmra.mxu0 %v554
        %v758 = vpop.f32.mrf.mxu0
        %v759 = vadd.f32 0.0, %v758
        %760 = vmatmul.f32.gmra.mxu0 %v557
        %v761 = vpop.f32.mrf.mxu0
        %v762 = vadd.f32 0.0, %v761
        %763 = vmatmul.f32.gmra.mxu0 %v560
        %v764 = vpop.f32.mrf.mxu0
        %v765 = vadd.f32 0.0, %v764
        %766 = vmatmul.f32.gmra.mxu0 %v563
        %v767 = vpop.f32.mrf.mxu0
        %v768 = vadd.f32 0.0, %v767
        %769 = vmatmul.f32.gmra.mxu0 %v566
        %v770 = vpop.f32.mrf.mxu0
        %v771 = vadd.f32 0.0, %v770
        %772 = vmatmul.f32.gmra.mxu0 %v569
        %v773 = vpop.f32.mrf.mxu0
        %v774 = vadd.f32 0.0, %v773
        %775 = vdwg.mxu0
        %776 = vmatpush.msra.mxu0 0.0
        %777 = vmatpush.msra.mxu0 0.0
        %778 = vmatpush.msra.mxu0 0.0
        %779 = vmatpush.msra.mxu0 0.0
        %780 = vmatpush.msra.mxu0 0.0
        %781 = vmatpush.msra.mxu0 0.0
        %782 = vmatpush.msra.mxu0 0.0
        %783 = vmatpush.msra.mxu0 0.0
        %784 = vmatpush.msra.mxu0 %v541
        %785 = vmatpush.msra.mxu0 %v533
        %786 = vmatpush.msra.mxu0 %v525
        %787 = vmatpush.msra.mxu0 %v517
        %788 = vmatpush.msra.mxu0 %v509
        %789 = vmatpush.msra.mxu0 %v501
        %790 = vmatpush.msra.mxu0 %v493
        %791 = vmatpush.msra.mxu0 %v485
        %792 = vmatmul.f32.gmra.mxu0 %v548
        %v793 = vpop.f32.mrf.mxu0
        %v794 = vadd.f32 0.0, %v793
        %795 = vmatmul.f32.gmra.mxu0 %v551
        %v796 = vpop.f32.mrf.mxu0
        %v797 = vadd.f32 0.0, %v796
        %798 = vmatmul.f32.gmra.mxu0 %v554
        %v799 = vpop.f32.mrf.mxu0
        %v800 = vadd.f32 0.0, %v799
        %801 = vmatmul.f32.gmra.mxu0 %v557
        %v802 = vpop.f32.mrf.mxu0
        %v803 = vadd.f32 0.0, %v802
        %804 = vmatmul.f32.gmra.mxu0 %v560
        %v805 = vpop.f32.mrf.mxu0
        %v806 = vadd.f32 0.0, %v805
        %807 = vmatmul.f32.gmra.mxu0 %v563
        %v808 = vpop.f32.mrf.mxu0
        %v809 = vadd.f32 0.0, %v808
        %810 = vmatmul.f32.gmra.mxu0 %v566
        %v811 = vpop.f32.mrf.mxu0
        %v812 = vadd.f32 0.0, %v811
        %813 = vmatmul.f32.gmra.mxu0 %v569
        %v814 = vpop.f32.mrf.mxu0
        %v815 = vadd.f32 0.0, %v814
        %816 = vdwg.mxu0
        %817 = vmatpush.msra.mxu0 0.0
        %818 = vmatpush.msra.mxu0 0.0
        %819 = vmatpush.msra.mxu0 0.0
        %820 = vmatpush.msra.mxu0 0.0
        %821 = vmatpush.msra.mxu0 0.0
        %822 = vmatpush.msra.mxu0 0.0
        %823 = vmatpush.msra.mxu0 0.0
        %824 = vmatpush.msra.mxu0 0.0
        %825 = vmatpush.msra.mxu0 %v542
        %826 = vmatpush.msra.mxu0 %v534
        %827 = vmatpush.msra.mxu0 %v526
        %828 = vmatpush.msra.mxu0 %v518
        %829 = vmatpush.msra.mxu0 %v510
        %830 = vmatpush.msra.mxu0 %v502
        %831 = vmatpush.msra.mxu0 %v494
        %832 = vmatpush.msra.mxu0 %v486
        %833 = vmatmul.f32.gmra.mxu0 %v548
        %v834 = vpop.f32.mrf.mxu0
        %v835 = vadd.f32 0.0, %v834
        %836 = vmatmul.f32.gmra.mxu0 %v551
        %v837 = vpop.f32.mrf.mxu0
        %v838 = vadd.f32 0.0, %v837
        %839 = vmatmul.f32.gmra.mxu0 %v554
        %v840 = vpop.f32.mrf.mxu0
        %v841 = vadd.f32 0.0, %v840
        %842 = vmatmul.f32.gmra.mxu0 %v557
        %v843 = vpop.f32.mrf.mxu0
        %v844 = vadd.f32 0.0, %v843
        %845 = vmatmul.f32.gmra.mxu0 %v560
        %v846 = vpop.f32.mrf.mxu0
        %v847 = vadd.f32 0.0, %v846
        %848 = vmatmul.f32.gmra.mxu0 %v563
        %v849 = vpop.f32.mrf.mxu0
        %v850 = vadd.f32 0.0, %v849
        %851 = vmatmul.f32.gmra.mxu0 %v566
        %v852 = vpop.f32.mrf.mxu0
        %v853 = vadd.f32 0.0, %v852
        %854 = vmatmul.f32.gmra.mxu0 %v569
        %v855 = vpop.f32.mrf.mxu0
        %v856 = vadd.f32 0.0, %v855
        %857 = vdwg.mxu0
        %858 = vmatpush.msra.mxu0 0.0
        %859 = vmatpush.msra.mxu0 0.0
        %860 = vmatpush.msra.mxu0 0.0
        %861 = vmatpush.msra.mxu0 0.0
        %862 = vmatpush.msra.mxu0 0.0
        %863 = vmatpush.msra.mxu0 0.0
        %864 = vmatpush.msra.mxu0 0.0
        %865 = vmatpush.msra.mxu0 0.0
        %866 = vmatpush.msra.mxu0 %v543
        %867 = vmatpush.msra.mxu0 %v535
        %868 = vmatpush.msra.mxu0 %v527
        %869 = vmatpush.msra.mxu0 %v519
        %870 = vmatpush.msra.mxu0 %v511
        %871 = vmatpush.msra.mxu0 %v503
        %872 = vmatpush.msra.mxu0 %v495
        %873 = vmatpush.msra.mxu0 %v487
        %874 = vmatmul.f32.gmra.mxu0 %v548
        %v875 = vpop.f32.mrf.mxu0
        %v876 = vadd.f32 0.0, %v875
        %877 = vmatmul.f32.gmra.mxu0 %v551
        %v878 = vpop.f32.mrf.mxu0
        %v879 = vadd.f32 0.0, %v878
        %880 = vmatmul.f32.gmra.mxu0 %v554
        %v881 = vpop.f32.mrf.mxu0
        %v882 = vadd.f32 0.0, %v881
        %883 = vmatmul.f32.gmra.mxu0 %v557
        %v884 = vpop.f32.mrf.mxu0
        %v885 = vadd.f32 0.0, %v884
        %886 = vmatmul.f32.gmra.mxu0 %v560
        %v887 = vpop.f32.mrf.mxu0
        %v888 = vadd.f32 0.0, %v887
        %889 = vmatmul.f32.gmra.mxu0 %v563
        %v890 = vpop.f32.mrf.mxu0
        %v891 = vadd.f32 0.0, %v890
        %892 = vmatmul.f32.gmra.mxu0 %v566
        %v893 = vpop.f32.mrf.mxu0
        %v894 = vadd.f32 0.0, %v893
        %895 = vmatmul.f32.gmra.mxu0 %v569
        %v896 = vpop.f32.mrf.mxu0
        %v897 = vadd.f32 0.0, %v896
        %898 = vdwg.mxu0
        %v899 = vld [vmem:[#allocation7] sm:$0xff]
        %v900 = vld [vmem:[#allocation7 + $0x8] sm:$0xff]
        %v901 = vld [vmem:[#allocation7 + $0x10] sm:$0xff]
        %v902 = vld [vmem:[#allocation7 + $0x18] sm:$0xff]
        %v903 = vld [vmem:[#allocation7 + $0x20] sm:$0xff]
        %v904 = vld [vmem:[#allocation7 + $0x28] sm:$0xff]
        %v905 = vld [vmem:[#allocation7 + $0x30] sm:$0xff]
        %v906 = vld [vmem:[#allocation7 + $0x38] sm:$0xff]
        %v907 = vld [vmem:[#allocation7 + $0x40] sm:$0xff]
        %v908 = vld [vmem:[#allocation7 + $0x48] sm:$0xff]
        %v909 = vld [vmem:[#allocation7 + $0x50] sm:$0xff]
        %v910 = vld [vmem:[#allocation7 + $0x58] sm:$0xff]
        %v911 = vld [vmem:[#allocation7 + $0x60] sm:$0xff]
        %v912 = vld [vmem:[#allocation7 + $0x68] sm:$0xff]
        %v913 = vld [vmem:[#allocation7 + $0x70] sm:$0xff]
        %v914 = vld [vmem:[#allocation7 + $0x78] sm:$0xff]
        %v915 = vld [vmem:[#allocation7 + $0x80] sm:$0xff]
        %v916 = vld [vmem:[#allocation7 + $0x88] sm:$0xff]
        %v917 = vld [vmem:[#allocation7 + $0x90] sm:$0xff]
        %v918 = vld [vmem:[#allocation7 + $0x98] sm:$0xff]
        %v919 = vld [vmem:[#allocation7 + $0xa0] sm:$0xff]
        %v920 = vld [vmem:[#allocation7 + $0xa8] sm:$0xff]
        %v921 = vld [vmem:[#allocation7 + $0xb0] sm:$0xff]
        %v922 = vld [vmem:[#allocation7 + $0xb8] sm:$0xff]
        %v923 = vld [vmem:[#allocation7 + $0xc0] sm:$0xff]
        %v924 = vld [vmem:[#allocation7 + $0xc8] sm:$0xff]
        %v925 = vld [vmem:[#allocation7 + $0xd0] sm:$0xff]
        %v926 = vld [vmem:[#allocation7 + $0xd8] sm:$0xff]
        %v927 = vld [vmem:[#allocation7 + $0xe0] sm:$0xff]
        %v928 = vld [vmem:[#allocation7 + $0xe8] sm:$0xff]
        %v929 = vld [vmem:[#allocation7 + $0xf0] sm:$0xff]
        %v930 = vld [vmem:[#allocation7 + $0xf8] sm:$0xff]
        %v931 = vld [vmem:[#allocation8] sm:$0xf]
        %v933 = vperm.slane %v931, 0
        %v934 = vperm.slane %v931, 1
        %v935 = vperm.slane %v931, 2
        %v936 = vperm.slane %v931, 3
        %v942 = vsel %vm546, %v471, 0
        %944 = vmatpush.msra.mxu0 0.0
        %945 = vmatpush.msra.mxu0 0.0
        %946 = vmatpush.msra.mxu0 0.0
        %947 = vmatpush.msra.mxu0 0.0
        %948 = vmatpush.msra.mxu0 0.0
        %949 = vmatpush.msra.mxu0 0.0
        %950 = vmatpush.msra.mxu0 0.0
        %951 = vmatpush.msra.mxu0 0.0
        %952 = vmatpush.msra.mxu0 %v927
        %953 = vmatpush.msra.mxu0 %v923
        %954 = vmatpush.msra.mxu0 %v919
        %955 = vmatpush.msra.mxu0 %v915
        %956 = vmatpush.msra.mxu0 %v911
        %957 = vmatpush.msra.mxu0 %v907
        %958 = vmatpush.msra.mxu0 %v903
        %959 = vmatpush.msra.mxu0 %v899
        %960 = vmatmul.f32.gmra.mxu0 %v942
        %v961 = vpop.f32.mrf.mxu0
        %v962 = vadd.f32 %v933, %v961
        %963 = vdwg.mxu0
        %964 = vmatpush.msra.mxu0 0.0
        %965 = vmatpush.msra.mxu0 0.0
        %966 = vmatpush.msra.mxu0 0.0
        %967 = vmatpush.msra.mxu0 0.0
        %968 = vmatpush.msra.mxu0 0.0
        %969 = vmatpush.msra.mxu0 0.0
        %970 = vmatpush.msra.mxu0 0.0
        %971 = vmatpush.msra.mxu0 0.0
        %972 = vmatpush.msra.mxu0 %v928
        %973 = vmatpush.msra.mxu0 %v924
        %974 = vmatpush.msra.mxu0 %v920
        %975 = vmatpush.msra.mxu0 %v916
        %976 = vmatpush.msra.mxu0 %v912
        %977 = vmatpush.msra.mxu0 %v908
        %978 = vmatpush.msra.mxu0 %v904
        %979 = vmatpush.msra.mxu0 %v900
        %980 = vmatmul.f32.gmra.mxu0 %v942
        %v981 = vpop.f32.mrf.mxu0
        %v982 = vadd.f32 %v934, %v981
        %983 = vdwg.mxu0
        %984 = vmatpush.msra.mxu0 0.0
        %985 = vmatpush.msra.mxu0 0.0
        %986 = vmatpush.msra.mxu0 0.0
        %987 = vmatpush.msra.mxu0 0.0
        %988 = vmatpush.msra.mxu0 0.0
        %989 = vmatpush.msra.mxu0 0.0
        %990 = vmatpush.msra.mxu0 0.0
        %991 = vmatpush.msra.mxu0 0.0
        %992 = vmatpush.msra.mxu0 %v929
        %993 = vmatpush.msra.mxu0 %v925
        %994 = vmatpush.msra.mxu0 %v921
        %995 = vmatpush.msra.mxu0 %v917
        %996 = vmatpush.msra.mxu0 %v913
        %997 = vmatpush.msra.mxu0 %v909
        %998 = vmatpush.msra.mxu0 %v905
        %999 = vmatpush.msra.mxu0 %v901
        %1000 = vmatmul.f32.gmra.mxu0 %v942
        %v1001 = vpop.f32.mrf.mxu0
        %v1002 = vadd.f32 %v935, %v1001
        %1003 = vdwg.mxu0
        %1004 = vmatpush.msra.mxu0 0.0
        %1005 = vmatpush.msra.mxu0 0.0
        %1006 = vmatpush.msra.mxu0 0.0
        %1007 = vmatpush.msra.mxu0 0.0
        %1008 = vmatpush.msra.mxu0 0.0
        %1009 = vmatpush.msra.mxu0 0.0
        %1010 = vmatpush.msra.mxu0 0.0
        %1011 = vmatpush.msra.mxu0 0.0
        %1012 = vmatpush.msra.mxu0 %v930
        %1013 = vmatpush.msra.mxu0 %v926
        %1014 = vmatpush.msra.mxu0 %v922
        %1015 = vmatpush.msra.mxu0 %v918
        %1016 = vmatpush.msra.mxu0 %v914
        %1017 = vmatpush.msra.mxu0 %v910
        %1018 = vmatpush.msra.mxu0 %v906
        %1019 = vmatpush.msra.mxu0 %v902
        %1020 = vmatmul.f32.gmra.mxu0 %v942
        %v1021 = vpop.f32.mrf.mxu0
        %v1022 = vadd.f32 %v936, %v1021
        %1023 = vdwg.mxu0
        %v1028 = vrot.slane %v982, 7
        %v1029 = vrot.slane %v1002, 6
        %v1030 = vrot.slane %v1022, 5
        %vm1031 = vcmask 1040384
        %v1032 = vsel %vm1031, %v962, %v1028
        %vm1033 = vcmask 1042434
        %v1034 = vsel %vm1033, %v1029, %v1030
        %vm1035 = vcmask 1041408
        %v1036 = vsel %vm1035, %v1032, %v1034
        %vm1037 = vcmask 1041409
        %v1038 = vsel %vm1037, %v962, %v1028
        %vm1039 = vcmask 1043459
        %v1040 = vsel %vm1039, %v1029, %v1030
        %vm1041 = vcmask 1042433
        %v1042 = vsel %vm1041, %v1038, %v1040
        %v1043 = vrot.slane %v1042, 1
        %v1044 = vsel %vm1033, %v962, %v1028
        %vm1045 = vcmask 1044484
        %v1046 = vsel %vm1045, %v1029, %v1030
        %vm1047 = vcmask 1043458
        %v1048 = vsel %vm1047, %v1044, %v1046
        %v1049 = vrot.slane %v1048, 2
        %v1050 = vsel %vm1039, %v962, %v1028
        %vm1051 = vcmask 1045509
        %v1052 = vsel %vm1051, %v1029, %v1030
        %vm1053 = vcmask 1044483
        %v1054 = vsel %vm1053, %v1050, %v1052
        %v1055 = vrot.slane %v1054, 3
        %v1056 = vsel %vm1045, %v962, %v1028
        %vm1057 = vcmask 1046534
        %v1058 = vsel %vm1057, %v1029, %v1030
        %vm1059 = vcmask 1045508
        %v1060 = vsel %vm1059, %v1056, %v1058
        %v1061 = vrot.slane %v1060, 4
        %v1062 = vsel %vm1051, %v962, %v1028
        %vm1063 = vcmask 1046528
        %v1064 = vsel %vm1063, %v1030, %v1029
        %vm1065 = vcmask 1046533
        %v1066 = vsel %vm1065, %v1062, %v1064
        %v1067 = vrot.slane %v1066, 5
        %v1068 = vsel %vm1057, %v962, %v1028
        %v1069 = vsel %vm1031, %v1029, %v1030
        %vm1070 = vcmask 1045504
        %v1071 = vsel %vm1070, %v1069, %v1068
        %v1072 = vrot.slane %v1071, 6
        %v1073 = vsel %vm1063, %v1028, %v962
        %v1074 = vsel %vm1037, %v1029, %v1030
        %vm1075 = vcmask 1046529
        %v1076 = vsel %vm1075, %v1074, %v1073
        %v1077 = vrot.slane %v1076, 7
        %v1078 = vperm.slane %v1036, 0
        %v1079 = vperm.slane %v1036, 1
        %v1080 = vperm.slane %v1036, 2
        %v1081 = vperm.slane %v1036, 3
        %v1082 = vperm.slane %v1043, 0
        %v1083 = vperm.slane %v1043, 1
        %v1084 = vperm.slane %v1043, 2
        %v1085 = vperm.slane %v1043, 3
        %v1086 = vperm.slane %v1049, 0
        %v1087 = vperm.slane %v1049, 1
        %v1088 = vperm.slane %v1049, 2
        %v1089 = vperm.slane %v1049, 3
        %v1090 = vperm.slane %v1055, 0
        %v1091 = vperm.slane %v1055, 1
        %v1092 = vperm.slane %v1055, 2
        %v1093 = vperm.slane %v1055, 3
        %v1094 = vperm.slane %v1061, 0
        %v1095 = vperm.slane %v1061, 1
        %v1096 = vperm.slane %v1061, 2
        %v1097 = vperm.slane %v1061, 3
        %v1098 = vperm.slane %v1067, 0
        %v1099 = vperm.slane %v1067, 1
        %v1100 = vperm.slane %v1067, 2
        %v1101 = vperm.slane %v1067, 3
        %v1102 = vperm.slane %v1072, 0
        %v1103 = vperm.slane %v1072, 1
        %v1104 = vperm.slane %v1072, 2
        %v1105 = vperm.slane %v1072, 3
        %v1106 = vperm.slane %v1077, 0
        %v1107 = vperm.slane %v1077, 1
        %v1108 = vperm.slane %v1077, 2
        %v1109 = vperm.slane %v1077, 3
        %v1142 = vadd.f32 %v589, %v1078
        %v1143 = vadd.f32 %v630, %v1079
        %v1144 = vadd.f32 %v671, %v1080
        %v1145 = vadd.f32 %v712, %v1081
        %v1146 = vadd.f32 %v592, %v1082
        %v1147 = vadd.f32 %v633, %v1083
        %v1148 = vadd.f32 %v674, %v1084
        %v1149 = vadd.f32 %v715, %v1085
        %v1150 = vadd.f32 %v595, %v1086
        %v1151 = vadd.f32 %v636, %v1087
        %v1152 = vadd.f32 %v677, %v1088
        %v1153 = vadd.f32 %v718, %v1089
        %v1154 = vadd.f32 %v598, %v1090
        %v1155 = vadd.f32 %v639, %v1091
        %v1156 = vadd.f32 %v680, %v1092
        %v1157 = vadd.f32 %v721, %v1093
        %v1158 = vadd.f32 %v601, %v1094
        %v1159 = vadd.f32 %v642, %v1095
        %v1160 = vadd.f32 %v683, %v1096
        %v1161 = vadd.f32 %v724, %v1097
        %v1162 = vadd.f32 %v604, %v1098
        %v1163 = vadd.f32 %v645, %v1099
        %v1164 = vadd.f32 %v686, %v1100
        %v1165 = vadd.f32 %v727, %v1101
        %v1166 = vadd.f32 %v607, %v1102
        %v1167 = vadd.f32 %v648, %v1103
        %v1168 = vadd.f32 %v689, %v1104
        %v1169 = vadd.f32 %v730, %v1105
        %v1170 = vadd.f32 %v610, %v1106
        %v1171 = vadd.f32 %v651, %v1107
        %v1172 = vadd.f32 %v692, %v1108
        %v1173 = vadd.f32 %v733, %v1109
        %v1174 = vtanh.pop %v1142
        %v1175 = vtanh.pop %v1143
        %v1176 = vtanh.pop %v1144
        %v1177 = vtanh.pop %v1145
        %v1178 = vtanh.pop %v1146
        %v1179 = vtanh.pop %v1147
        %v1180 = vtanh.pop %v1148
        %v1181 = vtanh.pop %v1149
        %v1182 = vtanh.pop %v1150
        %v1183 = vtanh.pop %v1151
        %v1184 = vtanh.pop %v1152
        %v1185 = vtanh.pop %v1153
        %v1186 = vtanh.pop %v1154
        %v1187 = vtanh.pop %v1155
        %v1188 = vtanh.pop %v1156
        %v1189 = vtanh.pop %v1157
        %v1190 = vtanh.pop %v1158
        %v1191 = vtanh.pop %v1159
        %v1192 = vtanh.pop %v1160
        %v1193 = vtanh.pop %v1161
        %v1194 = vtanh.pop %v1162
        %v1195 = vtanh.pop %v1163
        %v1196 = vtanh.pop %v1164
        %v1197 = vtanh.pop %v1165
        %v1198 = vtanh.pop %v1166
        %v1199 = vtanh.pop %v1167
        %v1200 = vtanh.pop %v1168
        %v1201 = vtanh.pop %v1169
        %v1202 = vtanh.pop %v1170
        %v1203 = vtanh.pop %v1171
        %v1204 = vtanh.pop %v1172
        %v1205 = vtanh.pop %v1173
        %v1207 = vperm.slane %v544, 0
        %v1208 = vperm.slane %v544, 1
        %v1209 = vperm.slane %v544, 2
        %v1210 = vperm.slane %v544, 3
        %v1215 = vmul.f32 %v1174, %v1207
        %v1216 = vmul.f32 %v1175, %v1208
        %v1217 = vmul.f32 %v1176, %v1209
        %v1218 = vmul.f32 %v1177, %v1210
        %v1219 = vmul.f32 %v1178, %v1207
        %v1220 = vmul.f32 %v1179, %v1208
        %v1221 = vmul.f32 %v1180, %v1209
        %v1222 = vmul.f32 %v1181, %v1210
        %v1223 = vmul.f32 %v1182, %v1207
        %v1224 = vmul.f32 %v1183, %v1208
        %v1225 = vmul.f32 %v1184, %v1209
        %v1226 = vmul.f32 %v1185, %v1210
        %v1227 = vmul.f32 %v1186, %v1207
        %v1228 = vmul.f32 %v1187, %v1208
        %v1229 = vmul.f32 %v1188, %v1209
        %v1230 = vmul.f32 %v1189, %v1210
        %v1231 = vmul.f32 %v1190, %v1207
        %v1232 = vmul.f32 %v1191, %v1208
        %v1233 = vmul.f32 %v1192, %v1209
        %v1234 = vmul.f32 %v1193, %v1210
        %v1235 = vmul.f32 %v1194, %v1207
        %v1236 = vmul.f32 %v1195, %v1208
        %v1237 = vmul.f32 %v1196, %v1209
        %v1238 = vmul.f32 %v1197, %v1210
        %v1239 = vmul.f32 %v1198, %v1207
        %v1240 = vmul.f32 %v1199, %v1208
        %v1241 = vmul.f32 %v1200, %v1209
        %v1242 = vmul.f32 %v1201, %v1210
        %v1243 = vmul.f32 %v1202, %v1207
        %v1244 = vmul.f32 %v1203, %v1208
        %v1245 = vmul.f32 %v1204, %v1209
        %v1246 = vmul.f32 %v1205, %v1210
        %v1247 = vadd.f32 %v1215, %v1216
        %v1248 = vadd.f32 %v1247, %v1217
        %v1249 = vadd.f32 %v1248, %v1218
        %1250 = vadd.xlane.f32.xlu0 %v1249
        %v1251 = vpop.xlane.xlu0 %1250
        %v1252 = vadd.f32 %v1219, %v1220
        %v1253 = vadd.f32 %v1252, %v1221
        %v1254 = vadd.f32 %v1253, %v1222
        %1255 = vadd.xlane.f32.xlu0 %v1254
        %v1256 = vpop.xlane.xlu0 %1255
        %v1257 = vadd.f32 %v1223, %v1224
        %v1258 = vadd.f32 %v1257, %v1225
        %v1259 = vadd.f32 %v1258, %v1226
        %1260 = vadd.xlane.f32.xlu0 %v1259
        %v1261 = vpop.xlane.xlu0 %1260
        %v1262 = vadd.f32 %v1227, %v1228
        %v1263 = vadd.f32 %v1262, %v1229
        %v1264 = vadd.f32 %v1263, %v1230
        %1265 = vadd.xlane.f32.xlu0 %v1264
        %v1266 = vpop.xlane.xlu0 %1265
        %v1267 = vadd.f32 %v1231, %v1232
        %v1268 = vadd.f32 %v1267, %v1233
        %v1269 = vadd.f32 %v1268, %v1234
        %1270 = vadd.xlane.f32.xlu0 %v1269
        %v1271 = vpop.xlane.xlu0 %1270
        %v1272 = vadd.f32 %v1235, %v1236
        %v1273 = vadd.f32 %v1272, %v1237
        %v1274 = vadd.f32 %v1273, %v1238
        %1275 = vadd.xlane.f32.xlu0 %v1274
        %v1276 = vpop.xlane.xlu0 %1275
        %v1277 = vadd.f32 %v1239, %v1240
        %v1278 = vadd.f32 %v1277, %v1241
        %v1279 = vadd.f32 %v1278, %v1242
        %1280 = vadd.xlane.f32.xlu0 %v1279
        %v1281 = vpop.xlane.xlu0 %1280
        %v1282 = vadd.f32 %v1243, %v1244
        %v1283 = vadd.f32 %v1282, %v1245
        %v1284 = vadd.f32 %v1283, %v1246
        %1285 = vadd.xlane.f32.xlu0 %v1284
        %v1286 = vpop.xlane.xlu0 %1285
        %v1295 = vlaneseq
        %v1296 = vand.u32 %v1295, 127
        %v1297 = vperm.slane %v1251, %v1296
        %v1298 = vperm.slane %v1256, %v1296
        %v1299 = vperm.slane %v1261, %v1296
        %v1300 = vperm.slane %v1266, %v1296
        %v1301 = vperm.slane %v1271, %v1296
        %v1302 = vperm.slane %v1276, %v1296
        %v1303 = vperm.slane %v1281, %v1296
        %v1304 = vperm.slane %v1286, %v1296
        %v1305 = vsel %vm1037, %v1298, %v1297
        %v1306 = vsel %vm1033, %v1299, %v1305
        %v1307 = vsel %vm1039, %v1300, %v1306
        %v1308 = vsel %vm1045, %v1301, %v1307
        %v1309 = vsel %vm1051, %v1302, %v1308
        %v1310 = vsel %vm1057, %v1303, %v1309
        %vm1311 = vcmask 1047559
        %v1312 = vsel %vm1311, %v1304, %v1310
        %vm1314 = vcmask 64512
        %v1315 = vsel %vm1314, %v1312, -inf
        %1316 = vmax.xlane.f32.xlu0 %v1315
        %v1317 = vpop.xlane.xlu0 %1316
        %v1319 = vperm.slane %v1317, 0
        %v1320 = vperm.slane %v1317, 1
        %v1321 = vperm.slane %v1317, 2
        %v1322 = vperm.slane %v1317, 3
        %v1323 = vperm.slane %v1317, 4
        %v1324 = vperm.slane %v1317, 5
        %v1325 = vperm.slane %v1317, 6
        %v1326 = vperm.slane %v1317, 7
        %v1335 = vsub.f32 %v1251, %v1319
        %v1336 = vsub.f32 %v1256, %v1320
        %v1337 = vsub.f32 %v1261, %v1321
        %v1338 = vsub.f32 %v1266, %v1322
        %v1339 = vsub.f32 %v1271, %v1323
        %v1340 = vsub.f32 %v1276, %v1324
        %v1341 = vsub.f32 %v1281, %v1325
        %v1342 = vsub.f32 %v1286, %v1326
        %v1343 = vmul.f32 %v1335, 1.442695
        %v1344 = vpow.pop %v1343
        %v1345 = vmul.f32 %v1336, 1.442695
        %v1346 = vpow.pop %v1345
        %v1347 = vmul.f32 %v1337, 1.442695
        %v1348 = vpow.pop %v1347
        %v1349 = vmul.f32 %v1338, 1.442695
        %v1350 = vpow.pop %v1349
        %v1351 = vmul.f32 %v1339, 1.442695
        %v1352 = vpow.pop %v1351
        %v1353 = vmul.f32 %v1340, 1.442695
        %v1354 = vpow.pop %v1353
        %v1355 = vmul.f32 %v1341, 1.442695
        %v1356 = vpow.pop %v1355
        %v1357 = vmul.f32 %v1342, 1.442695
        %v1358 = vpow.pop %v1357
        %1367 = vset.pattern.permute.xlu0 0
        %1368 = vperm.xlu0 %1367, %v1344
        %v1369 = vpop.permute.xlu0 %1368
        %1370 = vset.pattern.permute.xlu0 0
        %1371 = vperm.xlu0 %1370, %v1346
        %v1372 = vpop.permute.xlu0 %1371
        %1373 = vset.pattern.permute.xlu0 0
        %1374 = vperm.xlu0 %1373, %v1348
        %v1375 = vpop.permute.xlu0 %1374
        %1376 = vset.pattern.permute.xlu0 0
        %1377 = vperm.xlu0 %1376, %v1350
        %v1378 = vpop.permute.xlu0 %1377
        %1379 = vset.pattern.permute.xlu0 0
        %1380 = vperm.xlu0 %1379, %v1352
        %v1381 = vpop.permute.xlu0 %1380
        %1382 = vset.pattern.permute.xlu0 0
        %1383 = vperm.xlu0 %1382, %v1354
        %v1384 = vpop.permute.xlu0 %1383
        %1385 = vset.pattern.permute.xlu0 0
        %1386 = vperm.xlu0 %1385, %v1356
        %v1387 = vpop.permute.xlu0 %1386
        %1388 = vset.pattern.permute.xlu0 0
        %1389 = vperm.xlu0 %1388, %v1358
        %v1390 = vpop.permute.xlu0 %1389
        %v1391 = vperm.slane %v1369, %v1296
        %v1392 = vperm.slane %v1372, %v1296
        %v1393 = vperm.slane %v1375, %v1296
        %v1394 = vperm.slane %v1378, %v1296
        %v1395 = vperm.slane %v1381, %v1296
        %v1396 = vperm.slane %v1384, %v1296
        %v1397 = vperm.slane %v1387, %v1296
        %v1398 = vperm.slane %v1390, %v1296
        %v1399 = vsel %vm1037, %v1392, %v1391
        %v1400 = vsel %vm1033, %v1393, %v1399
        %v1401 = vsel %vm1039, %v1394, %v1400
        %v1402 = vsel %vm1045, %v1395, %v1401
        %v1403 = vsel %vm1051, %v1396, %v1402
        %v1404 = vsel %vm1057, %v1397, %v1403
        %v1405 = vsel %vm1311, %v1398, %v1404
        %v1407 = vsel %vm1314, %v1405, 0.0
        %1408 = vadd.xlane.f32.xlu0 %v1407
        %v1409 = vpop.xlane.xlu0 %1408
        %v1410 = vrcp.pop %v1409
        %v1412 = vperm.slane %v1410, 0
        %v1413 = vperm.slane %v1410, 1
        %v1414 = vperm.slane %v1410, 2
        %v1415 = vperm.slane %v1410, 3
        %v1416 = vperm.slane %v1410, 4
        %v1417 = vperm.slane %v1410, 5
        %v1418 = vperm.slane %v1410, 6
        %v1419 = vperm.slane %v1410, 7
        %v1428 = vmul.f32 %v1344, %v1412
        %v1429 = vmul.f32 %v1346, %v1413
        %v1430 = vmul.f32 %v1348, %v1414
        %v1431 = vmul.f32 %v1350, %v1415
        %v1432 = vmul.f32 %v1352, %v1416
        %v1433 = vmul.f32 %v1354, %v1417
        %v1434 = vmul.f32 %v1356, %v1418
        %v1435 = vmul.f32 %v1358, %v1419
        %1437 = vset.pattern.permute.xlu0 0
        %1438 = vperm.xlu0 %1437, %v1428
        %v1439 = vpop.permute.xlu0 %1438
        %1442 = vset.pattern.permute.xlu0 0
        %1443 = vperm.xlu0 %1442, %v1429
        %v1444 = vpop.permute.xlu0 %1443
        %1447 = vset.pattern.permute.xlu0 0
        %1448 = vperm.xlu0 %1447, %v1430
        %v1449 = vpop.permute.xlu0 %1448
        %1452 = vset.pattern.permute.xlu0 0
        %1453 = vperm.xlu0 %1452, %v1431
        %v1454 = vpop.permute.xlu0 %1453
        %1457 = vset.pattern.permute.xlu0 0
        %1458 = vperm.xlu0 %1457, %v1432
        %v1459 = vpop.permute.xlu0 %1458
        %1462 = vset.pattern.permute.xlu0 0
        %1463 = vperm.xlu0 %1462, %v1433
        %v1464 = vpop.permute.xlu0 %1463
        %1467 = vset.pattern.permute.xlu0 0
        %1468 = vperm.xlu0 %1467, %v1434
        %v1469 = vpop.permute.xlu0 %1468
        %1472 = vset.pattern.permute.xlu0 0
        %1473 = vperm.xlu0 %1472, %v1435
        %v1474 = vpop.permute.xlu0 %1473
        %v1476 = vmul.f32 %v1439, %v472
        %v1477 = vmul.f32 %v1444, %v473
        %v1478 = vmul.f32 %v1449, %v474
        %v1479 = vmul.f32 %v1454, %v475
        %v1480 = vmul.f32 %v1459, %v476
        %v1481 = vmul.f32 %v1464, %v477
        %v1482 = vmul.f32 %v1469, %v478
        %v1483 = vmul.f32 %v1474, %v479
        %v1484 = vsel %vm546, %v1476, 0.0
        %v1485 = vrot.slane %v1484, 4
        %v1486 = vadd.f32 %v1484, %v1485
        %v1487 = vrot.slane %v1486, 2
        %v1488 = vadd.f32 %v1486, %v1487
        %v1489 = vrot.slane %v1488, 1
        %v1490 = vadd.f32 %v1488, %v1489
        %v1491 = vsel %vm546, %v1477, 0.0
        %v1492 = vrot.slane %v1491, 4
        %v1493 = vadd.f32 %v1491, %v1492
        %v1494 = vrot.slane %v1493, 2
        %v1495 = vadd.f32 %v1493, %v1494
        %v1496 = vrot.slane %v1495, 1
        %v1497 = vadd.f32 %v1495, %v1496
        %v1498 = vsel %vm546, %v1478, 0.0
        %v1499 = vrot.slane %v1498, 4
        %v1500 = vadd.f32 %v1498, %v1499
        %v1501 = vrot.slane %v1500, 2
        %v1502 = vadd.f32 %v1500, %v1501
        %v1503 = vrot.slane %v1502, 1
        %v1504 = vadd.f32 %v1502, %v1503
        %v1505 = vsel %vm546, %v1479, 0.0
        %v1506 = vrot.slane %v1505, 4
        %v1507 = vadd.f32 %v1505, %v1506
        %v1508 = vrot.slane %v1507, 2
        %v1509 = vadd.f32 %v1507, %v1508
        %v1510 = vrot.slane %v1509, 1
        %v1511 = vadd.f32 %v1509, %v1510
        %v1512 = vsel %vm546, %v1480, 0.0
        %v1513 = vrot.slane %v1512, 4
        %v1514 = vadd.f32 %v1512, %v1513
        %v1515 = vrot.slane %v1514, 2
        %v1516 = vadd.f32 %v1514, %v1515
        %v1517 = vrot.slane %v1516, 1
        %v1518 = vadd.f32 %v1516, %v1517
        %v1519 = vsel %vm546, %v1481, 0.0
        %v1520 = vrot.slane %v1519, 4
        %v1521 = vadd.f32 %v1519, %v1520
        %v1522 = vrot.slane %v1521, 2
        %v1523 = vadd.f32 %v1521, %v1522
        %v1524 = vrot.slane %v1523, 1
        %v1525 = vadd.f32 %v1523, %v1524
        %v1526 = vsel %vm546, %v1482, 0.0
        %v1527 = vrot.slane %v1526, 4
        %v1528 = vadd.f32 %v1526, %v1527
        %v1529 = vrot.slane %v1528, 2
        %v1530 = vadd.f32 %v1528, %v1529
        %v1531 = vrot.slane %v1530, 1
        %v1532 = vadd.f32 %v1530, %v1531
        %v1533 = vsel %vm546, %v1483, 0.0
        %v1534 = vrot.slane %v1533, 4
        %v1535 = vadd.f32 %v1533, %v1534
        %v1536 = vrot.slane %v1535, 2
        %v1537 = vadd.f32 %v1535, %v1536
        %v1538 = vrot.slane %v1537, 1
        %v1539 = vadd.f32 %v1537, %v1538
        %v1548 = vsel %vm1037, %v1497, %v1490
        %v1549 = vsel %vm1033, %v1504, %v1548
        %v1550 = vsel %vm1039, %v1511, %v1549
        %v1551 = vsel %vm1045, %v1518, %v1550
        %v1552 = vsel %vm1051, %v1525, %v1551
        %v1553 = vsel %vm1057, %v1532, %v1552
        %v1554 = vsel %vm1311, %v1539, %v1553
        %v1556 = vadd.f32 %v471, %v1554
        %v1558 = vsel %vm546, %v1556, 0
        %1560 = vmatpush.msra.mxu0 0.0
        %1561 = vmatpush.msra.mxu0 0.0
        %1562 = vmatpush.msra.mxu0 0.0
        %1563 = vmatpush.msra.mxu0 0.0
        %1564 = vmatpush.msra.mxu0 0.0
        %1565 = vmatpush.msra.mxu0 0.0
        %1566 = vmatpush.msra.mxu0 0.0
        %1567 = vmatpush.msra.mxu0 0.0
        %1568 = vmatpush.msra.mxu0 %v536
        %1569 = vmatpush.msra.mxu0 %v528
        %1570 = vmatpush.msra.mxu0 %v520
        %1571 = vmatpush.msra.mxu0 %v512
        %1572 = vmatpush.msra.mxu0 %v504
        %1573 = vmatpush.msra.mxu0 %v496
        %1574 = vmatpush.msra.mxu0 %v488
        %1575 = vmatpush.msra.mxu0 %v480
        %1576 = vmatmul.f32.gmra.mxu0 %v1558
        %v1577 = vpop.f32.mrf.mxu0
        %v1578 = vadd.f32 0.0, %v1577
        %1579 = vdwg.mxu0
        %1580 = vmatpush.msra.mxu0 0.0
        %1581 = vmatpush.msra.mxu0 0.0
        %1582 = vmatpush.msra.mxu0 0.0
        %1583 = vmatpush.msra.mxu0 0.0
        %1584 = vmatpush.msra.mxu0 0.0
        %1585 = vmatpush.msra.mxu0 0.0
        %1586 = vmatpush.msra.mxu0 0.0
        %1587 = vmatpush.msra.mxu0 0.0
        %1588 = vmatpush.msra.mxu0 %v537
        %1589 = vmatpush.msra.mxu0 %v529
        %1590 = vmatpush.msra.mxu0 %v521
        %1591 = vmatpush.msra.mxu0 %v513
        %1592 = vmatpush.msra.mxu0 %v505
        %1593 = vmatpush.msra.mxu0 %v497
        %1594 = vmatpush.msra.mxu0 %v489
        %1595 = vmatpush.msra.mxu0 %v481
        %1596 = vmatmul.f32.gmra.mxu0 %v1558
        %v1597 = vpop.f32.mrf.mxu0
        %v1598 = vadd.f32 0.0, %v1597
        %1599 = vdwg.mxu0
        %1600 = vmatpush.msra.mxu0 0.0
        %1601 = vmatpush.msra.mxu0 0.0
        %1602 = vmatpush.msra.mxu0 0.0
        %1603 = vmatpush.msra.mxu0 0.0
        %1604 = vmatpush.msra.mxu0 0.0
        %1605 = vmatpush.msra.mxu0 0.0
        %1606 = vmatpush.msra.mxu0 0.0
        %1607 = vmatpush.msra.mxu0 0.0
        %1608 = vmatpush.msra.mxu0 %v538
        %1609 = vmatpush.msra.mxu0 %v530
        %1610 = vmatpush.msra.mxu0 %v522
        %1611 = vmatpush.msra.mxu0 %v514
        %1612 = vmatpush.msra.mxu0 %v506
        %1613 = vmatpush.msra.mxu0 %v498
        %1614 = vmatpush.msra.mxu0 %v490
        %1615 = vmatpush.msra.mxu0 %v482
        %1616 = vmatmul.f32.gmra.mxu0 %v1558
        %v1617 = vpop.f32.mrf.mxu0
        %v1618 = vadd.f32 0.0, %v1617
        %1619 = vdwg.mxu0
        %1620 = vmatpush.msra.mxu0 0.0
        %1621 = vmatpush.msra.mxu0 0.0
        %1622 = vmatpush.msra.mxu0 0.0
        %1623 = vmatpush.msra.mxu0 0.0
        %1624 = vmatpush.msra.mxu0 0.0
        %1625 = vmatpush.msra.mxu0 0.0
        %1626 = vmatpush.msra.mxu0 0.0
        %1627 = vmatpush.msra.mxu0 0.0
        %1628 = vmatpush.msra.mxu0 %v539
        %1629 = vmatpush.msra.mxu0 %v531
        %1630 = vmatpush.msra.mxu0 %v523
        %1631 = vmatpush.msra.mxu0 %v515
        %1632 = vmatpush.msra.mxu0 %v507
        %1633 = vmatpush.msra.mxu0 %v499
        %1634 = vmatpush.msra.mxu0 %v491
        %1635 = vmatpush.msra.mxu0 %v483
        %1636 = vmatmul.f32.gmra.mxu0 %v1558
        %v1637 = vpop.f32.mrf.mxu0
        %v1638 = vadd.f32 0.0, %v1637
        %1639 = vdwg.mxu0
        %v1644 = vrot.slane %v1598, 7
        %v1645 = vrot.slane %v1618, 6
        %v1646 = vrot.slane %v1638, 5
        %v1647 = vsel %vm1031, %v1578, %v1644
        %v1648 = vsel %vm1033, %v1645, %v1646
        %v1649 = vsel %vm1035, %v1647, %v1648
        %v1650 = vsel %vm1037, %v1578, %v1644
        %v1651 = vsel %vm1039, %v1645, %v1646
        %v1652 = vsel %vm1041, %v1650, %v1651
        %v1653 = vrot.slane %v1652, 1
        %v1654 = vsel %vm1033, %v1578, %v1644
        %v1655 = vsel %vm1045, %v1645, %v1646
        %v1656 = vsel %vm1047, %v1654, %v1655
        %v1657 = vrot.slane %v1656, 2
        %v1658 = vsel %vm1039, %v1578, %v1644
        %v1659 = vsel %vm1051, %v1645, %v1646
        %v1660 = vsel %vm1053, %v1658, %v1659
        %v1661 = vrot.slane %v1660, 3
        %v1662 = vsel %vm1045, %v1578, %v1644
        %v1663 = vsel %vm1057, %v1645, %v1646
        %v1664 = vsel %vm1059, %v1662, %v1663
        %v1665 = vrot.slane %v1664, 4
        %v1666 = vsel %vm1051, %v1578, %v1644
        %v1667 = vsel %vm1063, %v1646, %v1645
        %v1668 = vsel %vm1065, %v1666, %v1667
        %v1669 = vrot.slane %v1668, 5
        %v1670 = vsel %vm1057, %v1578, %v1644
        %v1671 = vsel %vm1031, %v1645, %v1646
        %v1672 = vsel %vm1070, %v1671, %v1670
        %v1673 = vrot.slane %v1672, 6
        %v1674 = vsel %vm1063, %v1644, %v1578
        %v1675 = vsel %vm1037, %v1645, %v1646
        %v1676 = vsel %vm1075, %v1675, %v1674
        %v1677 = vrot.slane %v1676, 7
        %v1678 = vperm.slane %v1649, 0
        %v1679 = vperm.slane %v1649, 1
        %v1680 = vperm.slane %v1649, 2
        %v1681 = vperm.slane %v1649, 3
        %v1682 = vperm.slane %v1653, 0
        %v1683 = vperm.slane %v1653, 1
        %v1684 = vperm.slane %v1653, 2
        %v1685 = vperm.slane %v1653, 3
        %v1686 = vperm.slane %v1657, 0
        %v1687 = vperm.slane %v1657, 1
        %v1688 = vperm.slane %v1657, 2
        %v1689 = vperm.slane %v1657, 3
        %v1690 = vperm.slane %v1661, 0
        %v1691 = vperm.slane %v1661, 1
        %v1692 = vperm.slane %v1661, 2
        %v1693 = vperm.slane %v1661, 3
        %v1694 = vperm.slane %v1665, 0
        %v1695 = vperm.slane %v1665, 1
        %v1696 = vperm.slane %v1665, 2
        %v1697 = vperm.slane %v1665, 3
        %v1698 = vperm.slane %v1669, 0
        %v1699 = vperm.slane %v1669, 1
        %v1700 = vperm.slane %v1669, 2
        %v1701 = vperm.slane %v1669, 3
        %v1702 = vperm.slane %v1673, 0
        %v1703 = vperm.slane %v1673, 1
        %v1704 = vperm.slane %v1673, 2
        %v1705 = vperm.slane %v1673, 3
        %v1706 = vperm.slane %v1677, 0
        %v1707 = vperm.slane %v1677, 1
        %v1708 = vperm.slane %v1677, 2
        %v1709 = vperm.slane %v1677, 3
        %v1742 = vadd.f32 %v753, %v1678
        %v1743 = vadd.f32 %v794, %v1679
        %v1744 = vadd.f32 %v835, %v1680
        %v1745 = vadd.f32 %v876, %v1681
        %v1746 = vadd.f32 %v756, %v1682
        %v1747 = vadd.f32 %v797, %v1683
        %v1748 = vadd.f32 %v838, %v1684
        %v1749 = vadd.f32 %v879, %v1685
        %v1750 = vadd.f32 %v759, %v1686
        %v1751 = vadd.f32 %v800, %v1687
        %v1752 = vadd.f32 %v841, %v1688
        %v1753 = vadd.f32 %v882, %v1689
        %v1754 = vadd.f32 %v762, %v1690
        %v1755 = vadd.f32 %v803, %v1691
        %v1756 = vadd.f32 %v844, %v1692
        %v1757 = vadd.f32 %v885, %v1693
        %v1758 = vadd.f32 %v765, %v1694
        %v1759 = vadd.f32 %v806, %v1695
        %v1760 = vadd.f32 %v847, %v1696
        %v1761 = vadd.f32 %v888, %v1697
        %v1762 = vadd.f32 %v768, %v1698
        %v1763 = vadd.f32 %v809, %v1699
        %v1764 = vadd.f32 %v850, %v1700
        %v1765 = vadd.f32 %v891, %v1701
        %v1766 = vadd.f32 %v771, %v1702
        %v1767 = vadd.f32 %v812, %v1703
        %v1768 = vadd.f32 %v853, %v1704
        %v1769 = vadd.f32 %v894, %v1705
        %v1770 = vadd.f32 %v774, %v1706
        %v1771 = vadd.f32 %v815, %v1707
        %v1772 = vadd.f32 %v856, %v1708
        %v1773 = vadd.f32 %v897, %v1709
        %v1774 = vtanh.pop %v1742
        %v1775 = vtanh.pop %v1743
        %v1776 = vtanh.pop %v1744
        %v1777 = vtanh.pop %v1745
        %v1778 = vtanh.pop %v1746
        %v1779 = vtanh.pop %v1747
        %v1780 = vtanh.pop %v1748
        %v1781 = vtanh.pop %v1749
        %v1782 = vtanh.pop %v1750
        %v1783 = vtanh.pop %v1751
        %v1784 = vtanh.pop %v1752
        %v1785 = vtanh.pop %v1753
        %v1786 = vtanh.pop %v1754
        %v1787 = vtanh.pop %v1755
        %v1788 = vtanh.pop %v1756
        %v1789 = vtanh.pop %v1757
        %v1790 = vtanh.pop %v1758
        %v1791 = vtanh.pop %v1759
        %v1792 = vtanh.pop %v1760
        %v1793 = vtanh.pop %v1761
        %v1794 = vtanh.pop %v1762
        %v1795 = vtanh.pop %v1763
        %v1796 = vtanh.pop %v1764
        %v1797 = vtanh.pop %v1765
        %v1798 = vtanh.pop %v1766
        %v1799 = vtanh.pop %v1767
        %v1800 = vtanh.pop %v1768
        %v1801 = vtanh.pop %v1769
        %v1802 = vtanh.pop %v1770
        %v1803 = vtanh.pop %v1771
        %v1804 = vtanh.pop %v1772
        %v1805 = vtanh.pop %v1773
        %v1807 = vperm.slane %v545, 0
        %v1808 = vperm.slane %v545, 1
        %v1809 = vperm.slane %v545, 2
        %v1810 = vperm.slane %v545, 3
        %v1815 = vmul.f32 %v1774, %v1807
        %v1816 = vmul.f32 %v1775, %v1808
        %v1817 = vmul.f32 %v1776, %v1809
        %v1818 = vmul.f32 %v1777, %v1810
        %v1819 = vmul.f32 %v1778, %v1807
        %v1820 = vmul.f32 %v1779, %v1808
        %v1821 = vmul.f32 %v1780, %v1809
        %v1822 = vmul.f32 %v1781, %v1810
        %v1823 = vmul.f32 %v1782, %v1807
        %v1824 = vmul.f32 %v1783, %v1808
        %v1825 = vmul.f32 %v1784, %v1809
        %v1826 = vmul.f32 %v1785, %v1810
        %v1827 = vmul.f32 %v1786, %v1807
        %v1828 = vmul.f32 %v1787, %v1808
        %v1829 = vmul.f32 %v1788, %v1809
        %v1830 = vmul.f32 %v1789, %v1810
        %v1831 = vmul.f32 %v1790, %v1807
        %v1832 = vmul.f32 %v1791, %v1808
        %v1833 = vmul.f32 %v1792, %v1809
        %v1834 = vmul.f32 %v1793, %v1810
        %v1835 = vmul.f32 %v1794, %v1807
        %v1836 = vmul.f32 %v1795, %v1808
        %v1837 = vmul.f32 %v1796, %v1809
        %v1838 = vmul.f32 %v1797, %v1810
        %v1839 = vmul.f32 %v1798, %v1807
        %v1840 = vmul.f32 %v1799, %v1808
        %v1841 = vmul.f32 %v1800, %v1809
        %v1842 = vmul.f32 %v1801, %v1810
        %v1843 = vmul.f32 %v1802, %v1807
        %v1844 = vmul.f32 %v1803, %v1808
        %v1845 = vmul.f32 %v1804, %v1809
        %v1846 = vmul.f32 %v1805, %v1810
        %v1847 = vadd.f32 %v1815, %v1816
        %v1848 = vadd.f32 %v1847, %v1817
        %v1849 = vadd.f32 %v1848, %v1818
        %1850 = vadd.xlane.f32.xlu0 %v1849
        %v1851 = vpop.xlane.xlu0 %1850
        %v1852 = vadd.f32 %v1819, %v1820
        %v1853 = vadd.f32 %v1852, %v1821
        %v1854 = vadd.f32 %v1853, %v1822
        %1855 = vadd.xlane.f32.xlu0 %v1854
        %v1856 = vpop.xlane.xlu0 %1855
        %v1857 = vadd.f32 %v1823, %v1824
        %v1858 = vadd.f32 %v1857, %v1825
        %v1859 = vadd.f32 %v1858, %v1826
        %1860 = vadd.xlane.f32.xlu0 %v1859
        %v1861 = vpop.xlane.xlu0 %1860
        %v1862 = vadd.f32 %v1827, %v1828
        %v1863 = vadd.f32 %v1862, %v1829
        %v1864 = vadd.f32 %v1863, %v1830
        %1865 = vadd.xlane.f32.xlu0 %v1864
        %v1866 = vpop.xlane.xlu0 %1865
        %v1867 = vadd.f32 %v1831, %v1832
        %v1868 = vadd.f32 %v1867, %v1833
        %v1869 = vadd.f32 %v1868, %v1834
        %1870 = vadd.xlane.f32.xlu0 %v1869
        %v1871 = vpop.xlane.xlu0 %1870
        %v1872 = vadd.f32 %v1835, %v1836
        %v1873 = vadd.f32 %v1872, %v1837
        %v1874 = vadd.f32 %v1873, %v1838
        %1875 = vadd.xlane.f32.xlu0 %v1874
        %v1876 = vpop.xlane.xlu0 %1875
        %v1877 = vadd.f32 %v1839, %v1840
        %v1878 = vadd.f32 %v1877, %v1841
        %v1879 = vadd.f32 %v1878, %v1842
        %1880 = vadd.xlane.f32.xlu0 %v1879
        %v1881 = vpop.xlane.xlu0 %1880
        %v1882 = vadd.f32 %v1843, %v1844
        %v1883 = vadd.f32 %v1882, %v1845
        %v1884 = vadd.f32 %v1883, %v1846
        %1885 = vadd.xlane.f32.xlu0 %v1884
        %v1886 = vpop.xlane.xlu0 %1885
        %v1895 = vperm.slane %v1851, %v1296
        %v1896 = vperm.slane %v1856, %v1296
        %v1897 = vperm.slane %v1861, %v1296
        %v1898 = vperm.slane %v1866, %v1296
        %v1899 = vperm.slane %v1871, %v1296
        %v1900 = vperm.slane %v1876, %v1296
        %v1901 = vperm.slane %v1881, %v1296
        %v1902 = vperm.slane %v1886, %v1296
        %v1903 = vsel %vm1037, %v1896, %v1895
        %v1904 = vsel %vm1033, %v1897, %v1903
        %v1905 = vsel %vm1039, %v1898, %v1904
        %v1906 = vsel %vm1045, %v1899, %v1905
        %v1907 = vsel %vm1051, %v1900, %v1906
        %v1908 = vsel %vm1057, %v1901, %v1907
        %v1909 = vsel %vm1311, %v1902, %v1908
        %v1911 = vsel %vm1314, %v1909, -inf
        %1912 = vmax.xlane.f32.xlu0 %v1911
        %v1913 = vpop.xlane.xlu0 %1912
        %v1915 = vperm.slane %v1913, 0
        %v1916 = vperm.slane %v1913, 1
        %v1917 = vperm.slane %v1913, 2
        %v1918 = vperm.slane %v1913, 3
        %v1919 = vperm.slane %v1913, 4
        %v1920 = vperm.slane %v1913, 5
        %v1921 = vperm.slane %v1913, 6
        %v1922 = vperm.slane %v1913, 7
        %v1931 = vsub.f32 %v1851, %v1915
        %v1932 = vsub.f32 %v1856, %v1916
        %v1933 = vsub.f32 %v1861, %v1917
        %v1934 = vsub.f32 %v1866, %v1918
        %v1935 = vsub.f32 %v1871, %v1919
        %v1936 = vsub.f32 %v1876, %v1920
        %v1937 = vsub.f32 %v1881, %v1921
        %v1938 = vsub.f32 %v1886, %v1922
        %v1939 = vmul.f32 %v1931, 1.442695
        %v1940 = vpow.pop %v1939
        %v1941 = vmul.f32 %v1932, 1.442695
        %v1942 = vpow.pop %v1941
        %v1943 = vmul.f32 %v1933, 1.442695
        %v1944 = vpow.pop %v1943
        %v1945 = vmul.f32 %v1934, 1.442695
        %v1946 = vpow.pop %v1945
        %v1947 = vmul.f32 %v1935, 1.442695
        %v1948 = vpow.pop %v1947
        %v1949 = vmul.f32 %v1936, 1.442695
        %v1950 = vpow.pop %v1949
        %v1951 = vmul.f32 %v1937, 1.442695
        %v1952 = vpow.pop %v1951
        %v1953 = vmul.f32 %v1938, 1.442695
        %v1954 = vpow.pop %v1953
        %1963 = vset.pattern.permute.xlu0 0
        %1964 = vperm.xlu0 %1963, %v1940
        %v1965 = vpop.permute.xlu0 %1964
        %1966 = vset.pattern.permute.xlu0 0
        %1967 = vperm.xlu0 %1966, %v1942
        %v1968 = vpop.permute.xlu0 %1967
        %1969 = vset.pattern.permute.xlu0 0
        %1970 = vperm.xlu0 %1969, %v1944
        %v1971 = vpop.permute.xlu0 %1970
        %1972 = vset.pattern.permute.xlu0 0
        %1973 = vperm.xlu0 %1972, %v1946
        %v1974 = vpop.permute.xlu0 %1973
        %1975 = vset.pattern.permute.xlu0 0
        %1976 = vperm.xlu0 %1975, %v1948
        %v1977 = vpop.permute.xlu0 %1976
        %1978 = vset.pattern.permute.xlu0 0
        %1979 = vperm.xlu0 %1978, %v1950
        %v1980 = vpop.permute.xlu0 %1979
        %1981 = vset.pattern.permute.xlu0 0
        %1982 = vperm.xlu0 %1981, %v1952
        %v1983 = vpop.permute.xlu0 %1982
        %1984 = vset.pattern.permute.xlu0 0
        %1985 = vperm.xlu0 %1984, %v1954
        %v1986 = vpop.permute.xlu0 %1985
        %v1987 = vperm.slane %v1965, %v1296
        %v1988 = vperm.slane %v1968, %v1296
        %v1989 = vperm.slane %v1971, %v1296
        %v1990 = vperm.slane %v1974, %v1296
        %v1991 = vperm.slane %v1977, %v1296
        %v1992 = vperm.slane %v1980, %v1296
        %v1993 = vperm.slane %v1983, %v1296
        %v1994 = vperm.slane %v1986, %v1296
        %v1995 = vsel %vm1037, %v1988, %v1987
        %v1996 = vsel %vm1033, %v1989, %v1995
        %v1997 = vsel %vm1039, %v1990, %v1996
        %v1998 = vsel %vm1045, %v1991, %v1997
        %v1999 = vsel %vm1051, %v1992, %v1998
        %v2000 = vsel %vm1057, %v1993, %v1999
        %v2001 = vsel %vm1311, %v1994, %v2000
        %v2003 = vsel %vm1314, %v2001, 0.0
        %2004 = vadd.xlane.f32.xlu0 %v2003
        %v2005 = vpop.xlane.xlu0 %2004
        %v2006 = vrcp.pop %v2005
        %v2008 = vperm.slane %v2006, 0
        %v2009 = vperm.slane %v2006, 1
        %v2010 = vperm.slane %v2006, 2
        %v2011 = vperm.slane %v2006, 3
        %v2012 = vperm.slane %v2006, 4
        %v2013 = vperm.slane %v2006, 5
        %v2014 = vperm.slane %v2006, 6
        %v2015 = vperm.slane %v2006, 7
        %v2024 = vmul.f32 %v1940, %v2008
        %v2025 = vmul.f32 %v1942, %v2009
        %v2026 = vmul.f32 %v1944, %v2010
        %v2027 = vmul.f32 %v1946, %v2011
        %v2028 = vmul.f32 %v1948, %v2012
        %v2029 = vmul.f32 %v1950, %v2013
        %v2030 = vmul.f32 %v1952, %v2014
        %v2031 = vmul.f32 %v1954, %v2015
        %2033 = vset.pattern.permute.xlu0 0
        %2034 = vperm.xlu0 %2033, %v2024
        %v2035 = vpop.permute.xlu0 %2034
        %2038 = vset.pattern.permute.xlu0 0
        %2039 = vperm.xlu0 %2038, %v2025
        %v2040 = vpop.permute.xlu0 %2039
        %2043 = vset.pattern.permute.xlu0 0
        %2044 = vperm.xlu0 %2043, %v2026
        %v2045 = vpop.permute.xlu0 %2044
        %2048 = vset.pattern.permute.xlu0 0
        %2049 = vperm.xlu0 %2048, %v2027
        %v2050 = vpop.permute.xlu0 %2049
        %2053 = vset.pattern.permute.xlu0 0
        %2054 = vperm.xlu0 %2053, %v2028
        %v2055 = vpop.permute.xlu0 %2054
        %2058 = vset.pattern.permute.xlu0 0
        %2059 = vperm.xlu0 %2058, %v2029
        %v2060 = vpop.permute.xlu0 %2059
        %2063 = vset.pattern.permute.xlu0 0
        %2064 = vperm.xlu0 %2063, %v2030
        %v2065 = vpop.permute.xlu0 %2064
        %2068 = vset.pattern.permute.xlu0 0
        %2069 = vperm.xlu0 %2068, %v2031
        %v2070 = vpop.permute.xlu0 %2069
        %v2072 = vmul.f32 %v2035, %v472
        %v2073 = vmul.f32 %v2040, %v473
        %v2074 = vmul.f32 %v2045, %v474
        %v2075 = vmul.f32 %v2050, %v475
        %v2076 = vmul.f32 %v2055, %v476
        %v2077 = vmul.f32 %v2060, %v477
        %v2078 = vmul.f32 %v2065, %v478
        %v2079 = vmul.f32 %v2070, %v479
        %v2080 = vsel %vm546, %v2072, 0.0
        %v2081 = vrot.slane %v2080, 4
        %v2082 = vadd.f32 %v2080, %v2081
        %v2083 = vrot.slane %v2082, 2
        %v2084 = vadd.f32 %v2082, %v2083
        %v2085 = vrot.slane %v2084, 1
        %v2086 = vadd.f32 %v2084, %v2085
        %v2087 = vsel %vm546, %v2073, 0.0
        %v2088 = vrot.slane %v2087, 4
        %v2089 = vadd.f32 %v2087, %v2088
        %v2090 = vrot.slane %v2089, 2
        %v2091 = vadd.f32 %v2089, %v2090
        %v2092 = vrot.slane %v2091, 1
        %v2093 = vadd.f32 %v2091, %v2092
        %v2094 = vsel %vm546, %v2074, 0.0
        %v2095 = vrot.slane %v2094, 4
        %v2096 = vadd.f32 %v2094, %v2095
        %v2097 = vrot.slane %v2096, 2
        %v2098 = vadd.f32 %v2096, %v2097
        %v2099 = vrot.slane %v2098, 1
        %v2100 = vadd.f32 %v2098, %v2099
        %v2101 = vsel %vm546, %v2075, 0.0
        %v2102 = vrot.slane %v2101, 4
        %v2103 = vadd.f32 %v2101, %v2102
        %v2104 = vrot.slane %v2103, 2
        %v2105 = vadd.f32 %v2103, %v2104
        %v2106 = vrot.slane %v2105, 1
        %v2107 = vadd.f32 %v2105, %v2106
        %v2108 = vsel %vm546, %v2076, 0.0
        %v2109 = vrot.slane %v2108, 4
        %v2110 = vadd.f32 %v2108, %v2109
        %v2111 = vrot.slane %v2110, 2
        %v2112 = vadd.f32 %v2110, %v2111
        %v2113 = vrot.slane %v2112, 1
        %v2114 = vadd.f32 %v2112, %v2113
        %v2115 = vsel %vm546, %v2077, 0.0
        %v2116 = vrot.slane %v2115, 4
        %v2117 = vadd.f32 %v2115, %v2116
        %v2118 = vrot.slane %v2117, 2
        %v2119 = vadd.f32 %v2117, %v2118
        %v2120 = vrot.slane %v2119, 1
        %v2121 = vadd.f32 %v2119, %v2120
        %v2122 = vsel %vm546, %v2078, 0.0
        %v2123 = vrot.slane %v2122, 4
        %v2124 = vadd.f32 %v2122, %v2123
        %v2125 = vrot.slane %v2124, 2
        %v2126 = vadd.f32 %v2124, %v2125
        %v2127 = vrot.slane %v2126, 1
        %v2128 = vadd.f32 %v2126, %v2127
        %v2129 = vsel %vm546, %v2079, 0.0
        %v2130 = vrot.slane %v2129, 4
        %v2131 = vadd.f32 %v2129, %v2130
        %v2132 = vrot.slane %v2131, 2
        %v2133 = vadd.f32 %v2131, %v2132
        %v2134 = vrot.slane %v2133, 1
        %v2135 = vadd.f32 %v2133, %v2134
        %v2144 = vsel %vm1037, %v2093, %v2086
        %v2145 = vsel %vm1033, %v2100, %v2144
        %v2146 = vsel %vm1039, %v2107, %v2145
        %v2147 = vsel %vm1045, %v2114, %v2146
        %v2148 = vsel %vm1051, %v2121, %v2147
        %v2149 = vsel %vm1057, %v2128, %v2148
        %v2150 = vsel %vm1311, %v2135, %v2149
        %v2152 = vadd.f32 %v1556, %v2150
        %v2153 = vld [vmem:[#allocation13] sm:$0xff]
        %v2154 = vld [vmem:[#allocation13 + $0x8] sm:$0xff]
        %v2155 = vld [vmem:[#allocation13 + $0x10] sm:$0xff]
        %v2156 = vld [vmem:[#allocation13 + $0x18] sm:$0xff]
        %v2157 = vld [vmem:[#allocation13 + $0x20] sm:$0xff]
        %v2158 = vld [vmem:[#allocation13 + $0x28] sm:$0xff]
        %v2159 = vld [vmem:[#allocation13 + $0x30] sm:$0xff]
        %v2160 = vld [vmem:[#allocation13 + $0x38] sm:$0xff]
        %v2161 = vld [vmem:[%s8] sm:$0x1]
        %v2163 = vperm.slane %v2161, 0
        %v2166 = vsel %vm546, %v2152, 0
        %2168 = vmatpush.msra.mxu0 0.0
        %2169 = vmatpush.msra.mxu0 0.0
        %2170 = vmatpush.msra.mxu0 0.0
        %2171 = vmatpush.msra.mxu0 0.0
        %2172 = vmatpush.msra.mxu0 0.0
        %2173 = vmatpush.msra.mxu0 0.0
        %2174 = vmatpush.msra.mxu0 0.0
        %2175 = vmatpush.msra.mxu0 0.0
        %2176 = vmatpush.msra.mxu0 %v2160
        %2177 = vmatpush.msra.mxu0 %v2159
        %2178 = vmatpush.msra.mxu0 %v2158
        %2179 = vmatpush.msra.mxu0 %v2157
        %2180 = vmatpush.msra.mxu0 %v2156
        %2181 = vmatpush.msra.mxu0 %v2155
        %2182 = vmatpush.msra.mxu0 %v2154
        %2183 = vmatpush.msra.mxu0 %v2153
        %2184 = vmatmul.f32.gmra.mxu0 %v2166
        %v2185 = vpop.f32.mrf.mxu0
        %v2186 = vadd.f32 %v2163, %v2185
        %2187 = vdwg.mxu0
        %2188 = vst [vmem:[%s469] sm:$0xff] %v2186
        %s2189 = sand.u32 %s238, 1
        %s2190 = scalar_lea.sflag [#allocation4], %s2189
        %s2191 = sand.u32 %s238, 1
        %s2192 = smul.addr %s2191, 8
        %s2193 = scalar_lea.vmem [#allocation14], %s2192
        // Predicated region
        $region85: #{tpu_custom_call.1} parent=55 // pred_check
          %p2194 = pneg %p248
        $region86: #{tpu_custom_call.1} parent=55 // pred_check_branch
          %2196 = sbr.rel (%p2194) target = $region88
        $region87: #{tpu_custom_call.1} parent=55 // pred_region
          %2198 = vsyncadd %s2190, 0
          %s2199 = smul.addr %s31, 8
          %s2200 = scalar_lea.hbm %s9, %s2199
          %s2202 = sshll.u32 %s2193, 4
          %s2203 = int_to_ptr.vmem [resolvable:$true] %s2202
          %s2204 = sshll.u32 %s2200, 4
          %s2205 = int_to_ptr.hbm [resolvable:$true] %s2204
          %2207 = dma.vmem_to_hbm [thread:$0]  %s2203, 128, %s2205, %s2190
        $region88: #{tpu_custom_call.1} parent=55 // pred_fallthru
          _
      $region56: #{tpu_custom_call.1} parent=5 // pred_fallthru
        _
      %p2208 = scmp.le.s32.totalorder 2, %s26
      // Predicated region
      $region89: #{tpu_custom_call.1} parent=5 // pred_check
        %p2209 = pneg %p2208
      $region90: #{tpu_custom_call.1} parent=5 // pred_check_branch
        %2211 = sbr.rel (%p2209) target = $region92
      $region91: #{tpu_custom_call.1} parent=5 // pred_region
        %s2212 = ssub.s32 %s26, 2
        // Predicated region
        $region93: #{tpu_custom_call.1} parent=91 // pred_check
          %p2213 = pneg %p254
        $region94: #{tpu_custom_call.1} parent=91 // pred_check_branch
          %2215 = sbr.rel (%p2213) target = $region96
        $region95: #{tpu_custom_call.1} parent=91 // pred_region
          %s2216 = sand.u32 %s239, 1
          %s2217 = scalar_lea.sflag [#allocation4], %s2216
          %s2218 = sand.u32 %s239, 1
          %s2219 = smul.addr %s2218, 8
          %s2220 = scalar_lea.vmem [#allocation14], %s2219
          %2222 = dma.done %s2217, 128
        $region96: #{tpu_custom_call.1} parent=91 // pred_fallthru
          _
      $region92: #{tpu_custom_call.1} parent=5 // pred_fallthru
        _
    $region6: #{tpu_custom_call.1} parent=1 // loop_footer
      %s30 = sadd.s32 1, %s26
    $region7: #{tpu_custom_call.1} parent=1 // loop_footer_branch
      %25 = sbr.rel target = $region3
    $region8: #{tpu_custom_call.1} parent=1 // loop_exit
      _
    %2223 = vsyncpa [#allocation3], 1
    %s2224 = scalar_lea.sflag [#allocation3], 1
    %2225 = vsyncpa %s2224, 1
    %2226 = vsyncpa [#allocation6], 1
    %s2227 = scalar_lea.sflag [#allocation6], 1
    %2228 = vsyncpa %s2227, 1
    %2229 = vsyncpa [#allocation9], 1
    %2230 = vsyncpa [#allocation12], 1
    %2231 = vsyncpa [#allocation4], 1
    %s2232 = scalar_lea.sflag [#allocation4], 1
    %2233 = vsyncpa %s2232, 1

</llo_original>
